<compile_context>
chip_gen: v7x
topology: tpu7x:2x2x1
jax: 0.10.0
libtpu: 0.0.40
codegen_flags: <defaults>
</compile_context>

<pallas_src>
import functools
import math

import jax
import jax.numpy as jnp
from jax.experimental import pallas as pl
from jax.experimental.pallas import tpu as pltpu


def _round_up(x, m):
    return ((x + m - 1) // m) * m


def _tile_for(dim, tile, base=128):
    """Effective tile (multiple of `base`, <= requested) and the padded dim."""
    t = min(tile, _round_up(dim, base))
    return t, _round_up(dim, t)


def _m_tiling(m, tm):
    """Batch tile (multiple of 8, <= tm) and the padded batch it divides."""
    t = min(tm, _round_up(m, 8))
    return t, _round_up(m, t)


def _block_weight(w, tk, tn, dtype):
    """Pad [K, N] to (tk, tn) multiples, cast, and re-lay out as
    [N_pad//tn, K_pad, tn] so every (tk, tn) weight tile is one contiguous
    DMA instead of tk strided rows."""
    K, N = w.shape
    K_pad, N_pad = _round_up(K, tk), _round_up(N, tn)
    w = jnp.pad(w, ((0, K_pad - K), (0, N_pad - N))).astype(dtype)
    return jnp.transpose(w.reshape(K_pad, N_pad // tn, tn), (1, 0, 2))


def _unblock_weight(wb, K, N):
    """Inverse of _block_weight (used by the reference check)."""
    nN, K_pad, tn = wb.shape
    return jnp.transpose(wb, (1, 0, 2)).reshape(K_pad, nN * tn)[:K, :N]


# ----------------------------------------------------------------------------
# Linear (+ optional tanh) kernel: 3-D grid over (M tiles, N tiles, K tiles).
# Output block is resident across the (innermost, "arbitrary") K axis and is
# used directly as the f32 accumulator; bias + activation on the last K step.
# ----------------------------------------------------------------------------
def _linear_kernel(x_ref, w_ref, b_ref, o_ref, *, activation):
    k = pl.program_id(2)

    @pl.when(k == 0)
    def _():
        o_ref[...] = jnp.zeros_like(o_ref)

    o_ref[...] += jnp.dot(
        x_ref[...].astype(w_ref.dtype),
        w_ref[...],
        preferred_element_type=jnp.float32,
    )

    @pl.when(k == pl.num_programs(2) - 1)
    def _():
        y = o_ref[...] + b_ref[...]
        if activation == "tanh":
            y = jnp.tanh(y)
        o_ref[...] = y


def linear_pallas_blocked(x, w_blocked, b, *, tk, tm, activation=None):
    """y = activation(x @ W + b) with W pre-blocked as [nN, K_pad, tn].

    x: [M_pad, K_pad] (bf16 or f32), b: [1, N_pad] f32.
    Returns [M_pad, N_pad] f32 (caller slices padding off).
    """
    M_pad, K_pad = x.shape
    nN, K_pad_w, tn = w_blocked.shape
    assert K_pad == K_pad_w, (K_pad, K_pad_w)
    assert K_pad % tk == 0 and M_pad % tm == 0
    N_pad = nN * tn
    assert b.shape == (1, N_pad), (b.shape, N_pad)

    grid = (M_pad // tm, nN, K_pad // tk)
    kernel = functools.partial(_linear_kernel, activation=activation)

    # Explicit VMEM budget: double-buffered blocks + margin (review item for
    # v5e's 16 MiB default scoped limit when tk is raised to 2048).
    per_step = (tm * tk * x.dtype.itemsize
                + tk * tn * w_blocked.dtype.itemsize
                + tn * 4
                + tm * tn * 4)
    vmem_limit = int(2 * per_step + (8 << 20))

    return pl.pallas_call(
        kernel,
        out_shape=jax.ShapeDtypeStruct((M_pad, N_pad), jnp.float32),
        grid_spec=pltpu.PrefetchScalarGridSpec(
            num_scalar_prefetch=0,
            grid=grid,
            in_specs=[
                pl.BlockSpec((tm, tk), lambda m, n, k: (m, k)),
                # Leading (tile) dim squeezed: kernel sees a contiguous
                # (tk, tn) weight tile.
                pl.BlockSpec((None, tk, tn), lambda m, n, k: (n, k, 0)),
                pl.BlockSpec((1, tn), lambda m, n, k: (0, n)),
            ],
            out_specs=pl.BlockSpec((tm, tn), lambda m, n, k: (m, n)),
        ),
        compiler_params=pltpu.CompilerParams(
            dimension_semantics=("parallel", "parallel", "arbitrary"),
            vmem_limit_bytes=vmem_limit,
        ),
    )(x, w_blocked, b)


# ----------------------------------------------------------------------------
# Fused "middle" kernel (tiled over M): [mu|logvar] projection (one
# lane-dense matmul), reparameterize z = mu + eps * exp(0.5*logvar), and
# decoder Linear(E, 2048).  All weights (~1.5 MB at real size) fit in VMEM.
# The (M, 2E) projection is written as a single lane-dense output; mu/logvar
# are sliced in the wrapper.  h_dec is emitted in bf16 for the dec2 stream.
# ----------------------------------------------------------------------------
def _fused_middle_kernel(h_ref, wml_ref, bml_ref, eps_ref, wd1_ref, bd1_ref,
                         mulv_ref, hdec_ref, *, embedding_size, training):
    ml = jnp.dot(h_ref[...], wml_ref[...],
                 preferred_element_type=jnp.float32) + bml_ref[...]
    mulv_ref[...] = ml
    E = embedding_size
    mu = ml[:, :E]
    logvar = ml[:, E:]
    if training:
        z = eps_ref[...] * jnp.exp(logvar * 0.5) + mu
    else:
        z = mu
    hdec = jnp.dot(z, wd1_ref[...],
                   preferred_element_type=jnp.float32) + bd1_ref[...]
    hdec_ref[...] = hdec.astype(hdec_ref.dtype)


def fused_middle_pallas(h, w_mulv, b_mulv, eps, w_dec1, b_dec1,
                        *, tm, training, hdec_dtype=jnp.bfloat16):
    M_pad, H = h.shape
    E2 = w_mulv.shape[1]
    E = E2 // 2
    assert M_pad % tm == 0
    kernel = functools.partial(_fused_middle_kernel, embedding_size=E,
                               training=training)

    per_m = (tm * H * 4 + tm * E * 4 + tm * E2 * 4
             + tm * H * jnp.dtype(hdec_dtype).itemsize)
    weights = H * E2 * 4 + E2 * 4 + E * H * 4 + H * 4
    vmem_limit = int(2 * (per_m + weights) + (8 << 20))

    mulv, hdec = pl.pallas_call(
        kernel,
        out_shape=(
            jax.ShapeDtypeStruct((M_pad, E2), jnp.float32),
            jax.ShapeDtypeStruct((M_pad, H), hdec_dtype),
        ),
        grid_spec=pltpu.PrefetchScalarGridSpec(
            num_scalar_prefetch=0,
            grid=(M_pad // tm,),
            in_specs=[
                pl.BlockSpec((tm, H), lambda m: (m, 0)),
                pl.BlockSpec((H, E2), lambda m: (0, 0)),
                pl.BlockSpec((1, E2), lambda m: (0, 0)),
                pl.BlockSpec((tm, E), lambda m: (m, 0)),
                pl.BlockSpec((E, H), lambda m: (0, 0)),
                pl.BlockSpec((1, H), lambda m: (0, 0)),
            ],
            out_specs=(
                pl.BlockSpec((tm, E2), lambda m: (m, 0)),
                pl.BlockSpec((tm, H), lambda m: (m, 0)),
            ),
        ),
        compiler_params=pltpu.CompilerParams(
            dimension_semantics=("parallel",),
            vmem_limit_bytes=vmem_limit,
        ),
    )(h, w_mulv, b_mulv, eps, w_dec1, b_dec1)
    return mulv, hdec


# ----------------------------------------------------------------------------
# Model: parameters + forward (matching the PyTorch module's semantics)
# ----------------------------------------------------------------------------
class SNPMapperVAE:
    HIDDEN = 2048   # hard-coded in the PyTorch module
    TK = 2048       # contraction tile for the big linears (dec2: exactly K)
    TN = 1024       # output-feature tile (2 N tiles for H; snps pad +0.1%)
    TM = 256        # batch tile

    def __init__(self, embedding_size=64, snps_size=37851, key=None,
                 stream_dtype=jnp.bfloat16):
        self.embedding_size = embedding_size
        self.snps_size = snps_size
        self.stream_dtype = stream_dtype
        self.act_dtype = jnp.bfloat16   # activations fed to the big matmuls
        H = self.HIDDEN

        # Tile choices / padded sizes for the big (snps-sized) dimensions.
        self.tk_enc1, self.snps_k_pad = _tile_for(snps_size, self.TK)
        self.tn_enc1, _ = _tile_for(H, self.TN)
        self.tk_dec2, _ = _tile_for(H, self.TK)          # == H: 1-step K axis
        self.tn_dec2, self.snps_n_pad = _tile_for(snps_size, self.TN)

        if key is None:
            key = jax.random.PRNGKey(42)
        keys = jax.random.split(key, 10)

        def init_linear(kw, kb, fan_in, fan_out):
            bound = 1.0 / math.sqrt(fan_in)
            w = jax.random.uniform(kw, (fan_in, fan_out), jnp.float32,
                                   -bound, bound)
            b = jax.random.uniform(kb, (1, fan_out), jnp.float32,
                                   -bound, bound)
            return w, b

        # Big weight-streaming layers: bf16, pre-padded and pre-blocked into
        # tile-contiguous [nN, K_pad, tn] layout once at init.
        w_enc1, self.b_enc1 = init_linear(keys[0], keys[1], snps_size, H)
        self.w_enc1_b = _block_weight(w_enc1, self.tk_enc1, self.tn_enc1,
                                      stream_dtype)

        # mu / logvar fused into one lane-dense [H, 2E] projection.
        w_mu, b_mu = init_linear(keys[2], keys[3], H, embedding_size)
        w_lv, b_lv = init_linear(keys[4], keys[5], H, embedding_size)
        self.w_mulv = jnp.concatenate([w_mu, w_lv], axis=1)   # [H, 2E]
        self.b_mulv = jnp.concatenate([b_mu, b_lv], axis=1)   # [1, 2E]

        self.w_dec1, self.b_dec1 = init_linear(keys[6], keys[7],
                                               embedding_size, H)

        w_dec2, b_dec2 = init_linear(keys[8], keys[9], H, snps_size)
        self.w_dec2_b = _block_weight(w_dec2, self.tk_dec2, self.tn_dec2,
                                      stream_dtype)
        self.b_dec2 = jnp.pad(b_dec2,
                              ((0, 0), (0, self.snps_n_pad - snps_size)))

        # PyTorch modules default to training mode.
        self.training = True

    def forward(self, x_in, eps):
        """x_in: [batch, snps_size] f32, eps: [batch, embedding_size] f32."""
        M = x_in.shape[0]
        tm, M_pad = _m_tiling(M, self.TM)
        pad_m = M_pad - M
        pad_k = self.snps_k_pad - self.snps_size

        # Pad + cast once (bf16 activations halve the activation DMA).
        x = x_in.astype(self.act_dtype)
        if pad_m or pad_k:
            x = jnp.pad(x, ((0, pad_m), (0, pad_k)))
        eps_p = eps if pad_m == 0 else jnp.pad(eps, ((0, pad_m), (0, 0)))

        # Encoder layer 1 (big, contiguous bf16 weight-tile streaming).
        h = linear_pallas_blocked(x, self.w_enc1_b, self.b_enc1,
                                  tk=self.tk_enc1, tm=tm)

        # Fused: mu|logvar projection + reparameterize + decoder Linear(E, H).
        # TODO(synk): eps is supplied by the caller (stands in for torch's
        # in-module std.normal_()); could be drawn in-kernel via pltpu.prng_*.
        mulv, h_dec = fused_middle_pallas(
            h, self.w_mulv, self.b_mulv, eps_p, self.w_dec1, self.b_dec1,
            tm=tm, training=self.training, hdec_dtype=self.act_dtype)

        # Decoder layer 2 (big) + Tanh.
        x_rec = linear_pallas_blocked(h_dec, self.w_dec2_b, self.b_dec2,
                                      tk=self.tk_dec2, tm=tm,
                                      activation="tanh")

        E = self.embedding_size
        return (x_rec[:M, :self.snps_size], mulv[:M, :E], mulv[:M, E:2 * E])


# ----------------------------------------------------------------------------
# Smoke test
# ----------------------------------------------------------------------------
if __name__ == "__main__":
    batch = 2
    embedding_size = 32
    snps_size = 512  # small stand-in for the default 37851

    root = jax.random.PRNGKey(0)
    k_x, k_eps, k_params = jax.random.split(root, 3)

    x_in = jax.random.normal(k_x, (batch, snps_size), dtype=jnp.float32)
    eps = jax.random.normal(k_eps, (batch, embedding_size), dtype=jnp.float32)

    model = SNPMapperVAE(
        embedding_size=embedding_size, snps_size=snps_size, key=k_params
    )

    x_rec, mu, logvar = model.forward(x_in, eps)
    jax.block_until_ready((x_rec, mu, logvar))

    # Pure-JAX reference following the same bf16 weight/activation numerics.
    w1 = _unblock_weight(model.w_enc1_b, snps_size, model.HIDDEN)     # bf16
    h_ref = jnp.dot(x_in.astype(w1.dtype), w1,
                    preferred_element_type=jnp.float32) + model.b_enc1
    mulv_ref = h_ref @ model.w_mulv + model.b_mulv
    mu_ref = mulv_ref[:, :embedding_size]
    lv_ref = mulv_ref[:, embedding_size:]
    z_ref = eps * jnp.exp(0.5 * lv_ref) + mu_ref
    hdec_ref = (z_ref @ model.w_dec1 + model.b_dec1).astype(model.act_dtype)
    w2 = _unblock_weight(model.w_dec2_b, model.HIDDEN, snps_size)     # bf16
    b2 = model.b_dec2[:, :snps_size]
    x_ref = jnp.tanh(
        jnp.dot(hdec_ref, w2, preferred_element_type=jnp.float32) + b2)

    assert x_rec.shape == (batch, snps_size)
    assert mu.shape == (batch, embedding_size)
    assert logvar.shape == (batch, embedding_size)
    assert jnp.allclose(mu, mu_ref, atol=3e-2), "mu mismatch"
    assert jnp.allclose(logvar, lv_ref, atol=3e-2), "logvar mismatch"
    assert jnp.allclose(x_rec, x_ref, atol=3e-2), "reconstruction mismatch"

    print("KERNEL_OK")
</pallas_src>

<mosaic_0001>
module attributes {stable_mosaic.version = 11 : i64} {
  func.func @_linear_kernel(%arg0: i32, %arg1: i32, %arg2: i32, %arg3: memref<8x512xbf16, #tpu.memory_space<vmem>>, %arg4: memref<1x512x1024xbf16, #tpu.memory_space<vmem>>, %arg5: memref<1x1024xf32, #tpu.memory_space<vmem>>, %arg6: memref<8x1024xf32, #tpu.memory_space<vmem>>) attributes {dimension_semantics = [#tpu.dimension_semantics<parallel>, #tpu.dimension_semantics<parallel>, #tpu.dimension_semantics<arbitrary>], iteration_bounds = array<i64: 1, 2, 1>, scalar_prefetch = 0 : i64, scratch_operands = 0 : i64, tpu.core_type = #tpu.core_type<tc>, window_params = [{transform_indices = @transform_0, window_bounds = array<i64: 8, 512>}, {transform_indices = @transform_1, window_bounds = array<i64: 1, 512, 1024>}, {transform_indices = @transform_2, window_bounds = array<i64: 1, 1024>}, {transform_indices = @transform_3, window_bounds = array<i64: 8, 1024>}]} {
    %c0_i32 = arith.constant 0 : i32
    %0 = arith.cmpi eq, %arg2, %c0_i32 : i32
    %1 = arith.extui %0 : i1 to i32
    %c0_i32_0 = arith.constant 0 : i32
    %2 = arith.cmpi ne, %1, %c0_i32_0 : i32
    scf.if %2 {
      %cst_11 = arith.constant 0.000000e+00 : f32
      %13 = vector.broadcast %cst_11 : f32 to vector<8x1024xf32>
      %c0_12 = arith.constant 0 : index
      %c0_13 = arith.constant 0 : index
      %14 = vector.load %arg6[%c0_12, %c0_13] : memref<8x1024xf32, #tpu.memory_space<vmem>>, vector<8x1024xf32>
      tpu.vector_store %arg6[%c0_12, %c0_13], %13 {strides = array<i32>} : memref<8x1024xf32, #tpu.memory_space<vmem>>, vector<8x1024xf32>,
    } else {
    }
    %c0 = arith.constant 0 : index
    %c0_1 = arith.constant 0 : index
    %3 = vector.load %arg6[%c0, %c0_1] : memref<8x1024xf32, #tpu.memory_space<vmem>>, vector<8x1024xf32>
    %c0_2 = arith.constant 0 : index
    %c0_3 = arith.constant 0 : index
    %4 = vector.load %arg3[%c0_2, %c0_3] : memref<8x512xbf16, #tpu.memory_space<vmem>>, vector<8x512xbf16>
    %c0_4 = arith.constant 0 : index
    %c0_5 = arith.constant 0 : index
    %c0_6 = arith.constant 0 : index
    %5 = vector.load %arg4[%c0_4, %c0_5, %c0_6] : memref<1x512x1024xbf16, #tpu.memory_space<vmem>>, vector<1x512x1024xbf16>
    %6 = vector.shape_cast %5 : vector<1x512x1024xbf16> to vector<512x1024xbf16>
    %cst = arith.constant dense<0.000000e+00> : vector<8x1024xf32>
    %7 = tpu.matmul %4, %6, %cst {dimension_numbers = #tpu.dot_dimension_numbers<[1], [0], [0], [1], [0, 0, 1, 1], [], []>} : vector<8x512xbf16>, vector<512x1024xbf16>, vector<8x1024xf32> -> vector<8x1024xf32>
    %8 = arith.addf %3, %7 : vector<8x1024xf32>
    %c0_7 = arith.constant 0 : index
    %c0_8 = arith.constant 0 : index
    %9 = vector.load %arg6[%c0_7, %c0_8] : memref<8x1024xf32, #tpu.memory_space<vmem>>, vector<8x1024xf32>
    tpu.vector_store %arg6[%c0_7, %c0_8], %8 {strides = array<i32>} : memref<8x1024xf32, #tpu.memory_space<vmem>>, vector<8x1024xf32>,
    %c0_i32_9 = arith.constant 0 : i32
    %10 = arith.cmpi eq, %arg2, %c0_i32_9 : i32
    %11 = arith.extui %10 : i1 to i32
    %c0_i32_10 = arith.constant 0 : i32
    %12 = arith.cmpi ne, %11, %c0_i32_10 : i32
    scf.if %12 {
      %c0_11 = arith.constant 0 : index
      %c0_12 = arith.constant 0 : index
      %13 = vector.load %arg6[%c0_11, %c0_12] : memref<8x1024xf32, #tpu.memory_space<vmem>>, vector<8x1024xf32>
      %c0_13 = arith.constant 0 : index
      %c0_14 = arith.constant 0 : index
      %14 = vector.load %arg5[%c0_13, %c0_14] : memref<1x1024xf32, #tpu.memory_space<vmem>>, vector<1x1024xf32>
      %15 = vector.broadcast %14 : vector<1x1024xf32> to vector<8x1024xf32>
      %16 = arith.addf %13, %15 : vector<8x1024xf32>
      %c0_15 = arith.constant 0 : index
      %c0_16 = arith.constant 0 : index
      %17 = vector.load %arg6[%c0_15, %c0_16] : memref<8x1024xf32, #tpu.memory_space<vmem>>, vector<8x1024xf32>
      tpu.vector_store %arg6[%c0_15, %c0_16], %16 {strides = array<i32>} : memref<8x1024xf32, #tpu.memory_space<vmem>>, vector<8x1024xf32>,
    } else {
    }
    return
  }
  func.func @transform_0(%arg0: i32, %arg1: i32, %arg2: i32) -> (i32, i32) {
    %c0_i32 = arith.constant 0 : i32
    return %arg0, %arg2 : i32, i32
  }
  func.func @transform_1(%arg0: i32, %arg1: i32, %arg2: i32) -> (i32, i32, i32) {
    %c0_i32 = arith.constant 0 : i32
    %c0_i32_0 = arith.constant 0 : i32
    return %arg1, %arg2, %c0_i32 : i32, i32, i32
  }
  func.func @transform_2(%arg0: i32, %arg1: i32, %arg2: i32) -> (i32, i32) {
    %c0_i32 = arith.constant 0 : i32
    %c0_i32_0 = arith.constant 0 : i32
    return %c0_i32, %arg1 : i32, i32
  }
  func.func @transform_3(%arg0: i32, %arg1: i32, %arg2: i32) -> (i32, i32) {
    %c0_i32 = arith.constant 0 : i32
    return %arg0, %arg1 : i32, i32
  }
}

</mosaic_0001>

<llo_original>
// kernel: tpu_custom_call.1
$region0: #{tpu_custom_call.1}
  #allocation0 [shape = 'u32[]', space=smem, size = 0x4, offset = 0x4, fixed_abs, tag = 'smem constant byte address 0x4 - core index']
  #allocation1 [shape = 'u32[144,128]{1,0:T(1,128)}', space=vmem, size = 0x12000, scoped, tag = 'internal scratch']
  %s0 = inlined_call_operand.hbm [shape: bf16[8,512], index: 0, kind: input, shape index: {}]
  %s1 = inlined_call_operand.hbm [shape: bf16[2,512,1024], index: 1, kind: input, shape index: {}]
  %s2 = inlined_call_operand.hbm [shape: f32[1,2048], index: 2, kind: input, shape index: {}]
  %s3 = inlined_call_operand.hbm [shape: f32[8,2048], index: 3, kind: output, shape index: {}]
  %s4 = sld [smem:[#allocation0]]
  $region65: #{tpu_custom_call.1} parent=0
    _
  %s6 = ssub.s32 1, %s4
  %s7 = scalar_select 0, %s6, %s4
  $region1: #{tpu_custom_call.1} parent=0
    #allocation2 [shape = 'u8[8192]{0}', space=vmem, size = 0x2000, scoped, tag = 'input window, operand 0, single buffered']
    #allocation3 [shape = 's32[2]{0}', space=sflag, size = 0x8, scoped, tag = 'scoped memory for tpu_custom_call.1']
    #allocation4 [shape = 's32[2]{0}', space=sflag, size = 0x8, scoped, tag = 'scoped memory for tpu_custom_call.1']
    #allocation5 [shape = 'u8[2097152]{0}', space=vmem, size = 0x200000, scoped, tag = 'input window, operand 1']
    #allocation6 [shape = 's32[2]{0}', space=sflag, size = 0x8, scoped, tag = 'scoped memory for tpu_custom_call.1']
    #allocation7 [shape = 'u8[8192]{0}', space=vmem, size = 0x2000, scoped, tag = 'input window, operand 2']
    #allocation8 [shape = 'u8[65536]{0}', space=vmem, size = 0x10000, scoped, tag = 'output window, operand 0']
    %8 = vsyncpa [#allocation3], 0
    %9 = vsyncpa [#allocation6], 0
    %s10 = scalar_lea.sflag [#allocation6], 1
    %11 = vsyncpa %s10, 0
    %12 = vsyncpa [#allocation4], 0
    %s13 = scalar_lea.sflag [#allocation4], 1
    %14 = vsyncpa %s13, 0
    loop: start=0, step=1, limit=4
    $region2: #{tpu_custom_call.1} parent=1 // loop_pre_header
      _
    $region3: #{tpu_custom_call.1} parent=1 // loop_header
      %s16 = sphi 0, %s20
      %p17 = scmp.ge.s32.totalorder %s16, 4
      %s23 = sphi 0, %s42
      %s24 = sphi 0, %s38
      %s25 = sphi 0, %s34
      %s26 = sphi 0, %s23
      %s27 = sphi 0, %s24
      %s28 = sphi 0, %s25
      %s29 = sphi 0, %s26
      %s30 = sphi 0, %s27
      %s31 = sphi 0, %s28
      %s47 = sphi 0, %s49
      %s50 = sphi 0, %s47
      %s51 = sphi 0, %s50
      %s67 = sphi 0, %s51
      %s75 = sphi 0, %s77
      %s78 = sphi 0, %s75
      %s79 = sphi 0, %s78
      %s95 = sphi 0, %s79
      %s101 = sphi 0, %s103
      %s104 = sphi 0, %s101
      %s105 = sphi 0, %s104
      %s121 = sphi 0, %s105
      %s129 = sphi 0, %s131
      %s132 = sphi 0, %s129
      %s133 = sphi 0, %s132
      %s149 = sphi 0, %s133
    $region4: #{tpu_custom_call.1} parent=1 // loop_header_branch
      %19 = sbr.rel (%p17) target = $region8
    $region5: #{tpu_custom_call.1} parent=1 // loop_body
      %s21 = ssub.s32 %s16, 1
      %s22 = ssub.s32 %s16, 2
      %s32 = sadd.s32 1, %s25
      %p33 = scmp.ge.s32.totalorder %s32, 1
      %s34 = scalar_select %p33, 0, %s32
      %s35 = sadd.s32 1, %s24
      %s36 = scalar_select %p33, %s35, %s24
      %p37 = scmp.ge.s32.totalorder %s36, 2
      %s38 = scalar_select %p37, 0, %s36
      %s39 = sadd.s32 1, %s23
      %s40 = scalar_select %p37, %s39, %s23
      %p41 = scmp.ge.s32.totalorder %s40, 1
      %s42 = scalar_select %p41, 0, %s40
      %s43 = ssub.s32 %s23, %s42
      %s44 = ssub.s32 %s25, %s34
      %s45 = sor.u32 %s43, %s44
      %p46 = scmp.eq.s32.totalorder %s45, 0
      %s48 = sadd.s32 %s47, 1
      %s49 = scalar_select %p46, %s47, %s48
      %p52 = pneg %p46
      %p53 = scmp.eq.s32.totalorder %s16, 1
      %p54 = por %p52, %p53
      %p55 = scmp.ne.s32.totalorder %s47, %s50
      %p56 = scmp.eq.s32.totalorder %s16, 0
      %p57 = por %p55, %p56
      %p58 = scmp.ne.s32.totalorder %s47, %s50
      %p59 = scmp.eq.s32.totalorder %s21, 1
      %p60 = por %p58, %p59
      %p61 = scmp.ne.s32.totalorder %s50, %s51
      %p62 = scmp.eq.s32.totalorder %s21, 0
      %p63 = por %p61, %p62
      %p64 = scmp.ne.s32.totalorder %s50, %s51
      %p65 = scmp.eq.s32.totalorder %s22, 1
      %p66 = por %p64, %p65
      %p68 = scmp.ne.s32.totalorder %s51, %s67
      %p69 = scmp.eq.s32.totalorder %s22, 0
      %p70 = por %p68, %p69
      %s71 = ssub.s32 %s24, %s38
      %s72 = ssub.s32 %s25, %s34
      %s73 = sor.u32 %s71, %s72
      %p74 = scmp.eq.s32.totalorder %s73, 0
      %s76 = sadd.s32 %s75, 1
      %s77 = scalar_select %p74, %s75, %s76
      %p80 = pneg %p74
      %p81 = scmp.eq.s32.totalorder %s16, 1
      %p82 = por %p80, %p81
      %p83 = scmp.ne.s32.totalorder %s75, %s78
      %p84 = scmp.eq.s32.totalorder %s16, 0
      %p85 = por %p83, %p84
      %p86 = scmp.ne.s32.totalorder %s75, %s78
      %p87 = scmp.eq.s32.totalorder %s21, 1
      %p88 = por %p86, %p87
      %p89 = scmp.ne.s32.totalorder %s78, %s79
      %p90 = scmp.eq.s32.totalorder %s21, 0
      %p91 = por %p89, %p90
      %p92 = scmp.ne.s32.totalorder %s78, %s79
      %p93 = scmp.eq.s32.totalorder %s22, 1
      %p94 = por %p92, %p93
      %p96 = scmp.ne.s32.totalorder %s79, %s95
      %p97 = scmp.eq.s32.totalorder %s22, 0
      %p98 = por %p96, %p97
      %s99 = ssub.s32 %s24, %s38
      %p100 = scmp.eq.s32.totalorder %s99, 0
      %s102 = sadd.s32 %s101, 1
      %s103 = scalar_select %p100, %s101, %s102
      %p106 = pneg %p100
      %p107 = scmp.eq.s32.totalorder %s16, 1
      %p108 = por %p106, %p107
      %p109 = scmp.ne.s32.totalorder %s101, %s104
      %p110 = scmp.eq.s32.totalorder %s16, 0
      %p111 = por %p109, %p110
      %p112 = scmp.ne.s32.totalorder %s101, %s104
      %p113 = scmp.eq.s32.totalorder %s21, 1
      %p114 = por %p112, %p113
      %p115 = scmp.ne.s32.totalorder %s104, %s105
      %p116 = scmp.eq.s32.totalorder %s21, 0
      %p117 = por %p115, %p116
      %p118 = scmp.ne.s32.totalorder %s104, %s105
      %p119 = scmp.eq.s32.totalorder %s22, 1
      %p120 = por %p118, %p119
      %p122 = scmp.ne.s32.totalorder %s105, %s121
      %p123 = scmp.eq.s32.totalorder %s22, 0
      %p124 = por %p122, %p123
      %s125 = ssub.s32 %s23, %s42
      %s126 = ssub.s32 %s24, %s38
      %s127 = sor.u32 %s125, %s126
      %p128 = scmp.eq.s32.totalorder %s127, 0
      %s130 = sadd.s32 %s129, 1
      %s131 = scalar_select %p128, %s129, %s130
      %p134 = pneg %p128
      %p135 = scmp.eq.s32.totalorder %s16, 1
      %p136 = por %p134, %p135
      %p137 = scmp.ne.s32.totalorder %s129, %s132
      %p138 = scmp.eq.s32.totalorder %s16, 0
      %p139 = por %p137, %p138
      %p140 = scmp.ne.s32.totalorder %s129, %s132
      %p141 = scmp.eq.s32.totalorder %s21, 1
      %p142 = por %p140, %p141
      %p143 = scmp.ne.s32.totalorder %s132, %s133
      %p144 = scmp.eq.s32.totalorder %s21, 0
      %p145 = por %p143, %p144
      %p146 = scmp.ne.s32.totalorder %s132, %s133
      %p147 = scmp.eq.s32.totalorder %s22, 1
      %p148 = por %p146, %p147
      %p150 = scmp.ne.s32.totalorder %s133, %s149
      %p151 = scmp.eq.s32.totalorder %s22, 0
      %p152 = por %p150, %p151
      %p153 = scmp.le.s32.totalorder 1, %s16
      %p154 = scmp.lt.s32.totalorder %s16, 3
      %p155 = pnand %p153, %p154
      %p156 = pneg %p155
      // Predicated region
      $region9: #{tpu_custom_call.1} parent=5 // pred_check
        _
      $region10: #{tpu_custom_call.1} parent=5 // pred_check_branch
        %158 = sbr.rel (%p155) target = $region12
      $region11: #{tpu_custom_call.1} parent=5 // pred_region
        %s159 = ssub.s32 %s16, 1
        // Predicated region
        $region13: #{tpu_custom_call.1} parent=11 // pred_check
          %p160 = pneg %p63
        $region14: #{tpu_custom_call.1} parent=11 // pred_check_branch
          %162 = sbr.rel (%p160) target = $region16
        $region15: #{tpu_custom_call.1} parent=11 // pred_region
          %s163 = smul.u32 4, %s28
          %s165 = ssub.s32 256, 256
          %166 = vsyncadd [#allocation3], %s165
          %s167 = smul.addr %s26, 4
          %s168 = sadd.s32 %s163, %s167
          %s169 = smul.addr %s168, 64
          %s170 = scalar_lea.hbm %s0, %s169
          %s172 = sshll.u32 [#allocation2], 4
          %s173 = int_to_ptr.vmem [resolvable:$true] %s172
          %175 = dma.hbm_to_vmem [thread:$0]  %s170, 256, %s173, [#allocation3]
        $region16: #{tpu_custom_call.1} parent=11 // pred_fallthru
          _
      $region12: #{tpu_custom_call.1} parent=5 // pred_fallthru
        _
      %p176 = scmp.lt.s32.totalorder %s16, 2
      // Predicated region
      $region17: #{tpu_custom_call.1} parent=5 // pred_check
        %p177 = pneg %p176
      $region18: #{tpu_custom_call.1} parent=5 // pred_check_branch
        %179 = sbr.rel (%p177) target = $region20
      $region19: #{tpu_custom_call.1} parent=5 // pred_region
        // Predicated region
        $region21: #{tpu_custom_call.1} parent=19 // pred_check
          %p180 = pneg %p85
        $region22: #{tpu_custom_call.1} parent=19 // pred_check_branch
          %182 = sbr.rel (%p180) target = $region24
        $region23: #{tpu_custom_call.1} parent=19 // pred_region
          %s183 = sand.u32 %s16, 1
          %s184 = scalar_lea.sflag [#allocation6], %s183
          %s185 = sand.u32 %s75, 1
          %s186 = smul.addr %s185, 2048
          %s187 = scalar_lea.vmem [#allocation5], %s186
          %s188 = smul.u32 64, %s25
          %s190 = ssub.s32 32768, 32768
          %191 = vsyncadd %s184, %s190
          %s192 = smul.addr %s188, 8
          %s193 = smul.addr %s24, 512
          %s194 = sadd.s32 %s192, %s193
          %s195 = smul.addr %s194, 64
          %s196 = scalar_lea.hbm %s1, %s195
          %s197 = sshll.u32 %s187, 4
          %s198 = int_to_ptr.vmem [resolvable:$true] %s197
          %203 = dma.hbm_to_vmem [thread:$0]  %s196, 32768, %s198, %s184, 512, 512, 32
        $region24: #{tpu_custom_call.1} parent=19 // pred_fallthru
          _
        // Predicated region
        $region25: #{tpu_custom_call.1} parent=19 // pred_check
          %p204 = pneg %p111
        $region26: #{tpu_custom_call.1} parent=19 // pred_check_branch
          %206 = sbr.rel (%p204) target = $region28
        $region27: #{tpu_custom_call.1} parent=19 // pred_region
          %s207 = sand.u32 %s16, 1
          %s208 = scalar_lea.sflag [#allocation6], %s207
          %s209 = sand.u32 %s101, 1
          %s210 = smul.addr %s209, 8
          %s211 = scalar_lea.vmem [#allocation7], %s210
          %s212 = smul.u32 8, %s24
          %s214 = ssub.s32 128, 128
          %215 = vsyncadd %s208, %s214
          %s216 = smul.addr %s212, 16
          %s217 = scalar_lea.hbm %s2, %s216
          %s219 = sshll.u32 %s211, 4
          %s220 = int_to_ptr.vmem [resolvable:$true] %s219
          %222 = dma.hbm_to_vmem [thread:$0]  %s217, 128, %s220, %s208
        $region28: #{tpu_custom_call.1} parent=19 // pred_fallthru
          _
      $region20: #{tpu_custom_call.1} parent=5 // pred_fallthru
        _
      %p223 = scmp.le.s32.totalorder 1, %s16
      %p224 = scmp.lt.s32.totalorder %s16, 3
      %p225 = pnand %p223, %p224
      %p226 = pneg %p225
      // Predicated region
      $region29: #{tpu_custom_call.1} parent=5 // pred_check
        _
      $region30: #{tpu_custom_call.1} parent=5 // pred_check_branch
        %228 = sbr.rel (%p225) target = $region32
      $region31: #{tpu_custom_call.1} parent=5 // pred_region
        %s229 = ssub.s32 %s16, 1
        // Predicated region
        $region33: #{tpu_custom_call.1} parent=31 // pred_check
          %p230 = pneg %p63
        $region34: #{tpu_custom_call.1} parent=31 // pred_check_branch
          %232 = sbr.rel (%p230) target = $region36
        $region35: #{tpu_custom_call.1} parent=31 // pred_region
          %233 = dma.done [#allocation3], 256
        $region36: #{tpu_custom_call.1} parent=31 // pred_fallthru
          _
        %s234 = sand.u32 %s21, 1
        %s235 = scalar_lea.sflag [#allocation6], %s234
        %s236 = sand.u32 %s78, 1
        %s237 = smul.addr %s236, 2048
        %s238 = scalar_lea.vmem [#allocation5], %s237
        // Predicated region
        $region37: #{tpu_custom_call.1} parent=31 // pred_check
          %p239 = pneg %p91
        $region38: #{tpu_custom_call.1} parent=31 // pred_check_branch
          %241 = sbr.rel (%p239) target = $region40
        $region39: #{tpu_custom_call.1} parent=31 // pred_region
          %242 = dma.done %s235, 32768
        $region40: #{tpu_custom_call.1} parent=31 // pred_fallthru
          _
        %s243 = sand.u32 %s21, 1
        %s244 = scalar_lea.sflag [#allocation6], %s243
        %s245 = sand.u32 %s104, 1
        %s246 = smul.addr %s245, 8
        %s247 = scalar_lea.vmem [#allocation7], %s246
        // Predicated region
        $region41: #{tpu_custom_call.1} parent=31 // pred_check
          %p248 = pneg %p117
        $region42: #{tpu_custom_call.1} parent=31 // pred_check_branch
          %250 = sbr.rel (%p248) target = $region44
        $region43: #{tpu_custom_call.1} parent=31 // pred_region
          %251 = dma.done %s244, 128
        $region44: #{tpu_custom_call.1} parent=31 // pred_fallthru
          _
        %p252 = pneg %p63
        %p253 = pneg %p60
        %s254 = sand.u32 %s21, 1
        %s255 = scalar_lea.sflag [#allocation6], %s254
        %s256 = sand.u32 %s78, 1
        %s257 = smul.addr %s256, 2048
        %s258 = scalar_lea.vmem [#allocation5], %s257
        %p259 = pneg %p91
        %p260 = pneg %p88
        %s261 = sand.u32 %s21, 1
        %s262 = scalar_lea.sflag [#allocation6], %s261
        %s263 = sand.u32 %s104, 1
        %s264 = smul.addr %s263, 8
        %s265 = scalar_lea.vmem [#allocation7], %s264
        %p266 = pneg %p117
        %p267 = pneg %p114
        %p268 = pneg %p145
        %p269 = pneg %p142
        %s270 = sand.u32 %s132, 1
        %s271 = scalar_lea.sflag [#allocation4], %s270
        %s272 = sand.u32 %s132, 1
        %s273 = smul.addr %s272, 64
        %s274 = scalar_lea.vmem [#allocation8], %s273
        %s275 = smul.u32 4, %s28
        %s276 = smul.u32 64, %s28
        %s277 = smul.u32 8, %s27
        %s278 = smul.u32 8, %s27
        %p279 = scmp.eq.s32.totalorder %s28, 0
        // Predicated region
        $region45: #{tpu_custom_call.1} parent=31 // pred_check
          %p280 = pneg %p279
        $region46: #{tpu_custom_call.1} parent=31 // pred_check_branch
          %282 = sbr.rel (%p280) target = $region48
        $region47: #{tpu_custom_call.1} parent=31 // pred_region
          %283 = vst [vmem:[%s274] sm:$0xff] 0.0
          %284 = vst [vmem:[%s274 + $0x8] sm:$0xff] 0.0
          %285 = vst [vmem:[%s274 + $0x10] sm:$0xff] 0.0
          %286 = vst [vmem:[%s274 + $0x18] sm:$0xff] 0.0
          %287 = vst [vmem:[%s274 + $0x20] sm:$0xff] 0.0
          %288 = vst [vmem:[%s274 + $0x28] sm:$0xff] 0.0
          %289 = vst [vmem:[%s274 + $0x30] sm:$0xff] 0.0
          %290 = vst [vmem:[%s274 + $0x38] sm:$0xff] 0.0
        $region48: #{tpu_custom_call.1} parent=31 // pred_fallthru
          _
        %v291 = vld [vmem:[%s274] sm:$0xff]
        %v292 = vld [vmem:[%s274 + $0x8] sm:$0xff]
        %v293 = vld [vmem:[%s274 + $0x10] sm:$0xff]
        %v294 = vld [vmem:[%s274 + $0x18] sm:$0xff]
        %v295 = vld [vmem:[%s274 + $0x20] sm:$0xff]
        %v296 = vld [vmem:[%s274 + $0x28] sm:$0xff]
        %v297 = vld [vmem:[%s274 + $0x30] sm:$0xff]
        %v298 = vld [vmem:[%s274 + $0x38] sm:$0xff]
        %v299 = vld [vmem:[#allocation2] sm:$0xff]
        %v300 = vld [vmem:[#allocation2 + $0x8] sm:$0xff]
        %v301 = vld [vmem:[%s238] sm:$0xff]
        %v302 = vld [vmem:[%s238 + $0x8] sm:$0xff]
        %v303 = vld [vmem:[%s238 + $0x10] sm:$0xff]
        %v304 = vld [vmem:[%s238 + $0x18] sm:$0xff]
        %v305 = vld [vmem:[%s238 + $0x20] sm:$0xff]
        %v306 = vld [vmem:[%s238 + $0x28] sm:$0xff]
        %v307 = vld [vmem:[%s238 + $0x30] sm:$0xff]
        %v308 = vld [vmem:[%s238 + $0x38] sm:$0xff]
        %v309 = vld [vmem:[%s238 + $0x40] sm:$0xff]
        %v310 = vld [vmem:[%s238 + $0x48] sm:$0xff]
        %v311 = vld [vmem:[%s238 + $0x50] sm:$0xff]
        %v312 = vld [vmem:[%s238 + $0x58] sm:$0xff]
        %v313 = vld [vmem:[%s238 + $0x60] sm:$0xff]
        %v314 = vld [vmem:[%s238 + $0x68] sm:$0xff]
        %v315 = vld [vmem:[%s238 + $0x70] sm:$0xff]
        %v316 = vld [vmem:[%s238 + $0x78] sm:$0xff]
        %v317 = vld [vmem:[%s238 + $0x80] sm:$0xff]
        %v318 = vld [vmem:[%s238 + $0x88] sm:$0xff]
        %v319 = vld [vmem:[%s238 + $0x90] sm:$0xff]
        %v320 = vld [vmem:[%s238 + $0x98] sm:$0xff]
        %v321 = vld [vmem:[%s238 + $0xa0] sm:$0xff]
        %v322 = vld [vmem:[%s238 + $0xa8] sm:$0xff]
        %v323 = vld [vmem:[%s238 + $0xb0] sm:$0xff]
        %v324 = vld [vmem:[%s238 + $0xb8] sm:$0xff]
        %v325 = vld [vmem:[%s238 + $0xc0] sm:$0xff]
        %v326 = vld [vmem:[%s238 + $0xc8] sm:$0xff]
        %v327 = vld [vmem:[%s238 + $0xd0] sm:$0xff]
        %v328 = vld [vmem:[%s238 + $0xd8] sm:$0xff]
        %v329 = vld [vmem:[%s238 + $0xe0] sm:$0xff]
        %v330 = vld [vmem:[%s238 + $0xe8] sm:$0xff]
        %v331 = vld [vmem:[%s238 + $0xf0] sm:$0xff]
        %v332 = vld [vmem:[%s238 + $0xf8] sm:$0xff]
        %v333 = vld [vmem:[%s238 + $0x100] sm:$0xff]
        %v334 = vld [vmem:[%s238 + $0x108] sm:$0xff]
        %v335 = vld [vmem:[%s238 + $0x110] sm:$0xff]
        %v336 = vld [vmem:[%s238 + $0x118] sm:$0xff]
        %v337 = vld [vmem:[%s238 + $0x120] sm:$0xff]
        %v338 = vld [vmem:[%s238 + $0x128] sm:$0xff]
        %v339 = vld [vmem:[%s238 + $0x130] sm:$0xff]
        %v340 = vld [vmem:[%s238 + $0x138] sm:$0xff]
        %v341 = vld [vmem:[%s238 + $0x140] sm:$0xff]
        %v342 = vld [vmem:[%s238 + $0x148] sm:$0xff]
        %v343 = vld [vmem:[%s238 + $0x150] sm:$0xff]
        %v344 = vld [vmem:[%s238 + $0x158] sm:$0xff]
        %v345 = vld [vmem:[%s238 + $0x160] sm:$0xff]
        %v346 = vld [vmem:[%s238 + $0x168] sm:$0xff]
        %v347 = vld [vmem:[%s238 + $0x170] sm:$0xff]
        %v348 = vld [vmem:[%s238 + $0x178] sm:$0xff]
        %v349 = vld [vmem:[%s238 + $0x180] sm:$0xff]
        %v350 = vld [vmem:[%s238 + $0x188] sm:$0xff]
        %v351 = vld [vmem:[%s238 + $0x190] sm:$0xff]
        %v352 = vld [vmem:[%s238 + $0x198] sm:$0xff]
        %v353 = vld [vmem:[%s238 + $0x1a0] sm:$0xff]
        %v354 = vld [vmem:[%s238 + $0x1a8] sm:$0xff]
        %v355 = vld [vmem:[%s238 + $0x1b0] sm:$0xff]
        %v356 = vld [vmem:[%s238 + $0x1b8] sm:$0xff]
        %v357 = vld [vmem:[%s238 + $0x1c0] sm:$0xff]
        %v358 = vld [vmem:[%s238 + $0x1c8] sm:$0xff]
        %v359 = vld [vmem:[%s238 + $0x1d0] sm:$0xff]
        %v360 = vld [vmem:[%s238 + $0x1d8] sm:$0xff]
        %v361 = vld [vmem:[%s238 + $0x1e0] sm:$0xff]
        %v362 = vld [vmem:[%s238 + $0x1e8] sm:$0xff]
        %v363 = vld [vmem:[%s238 + $0x1f0] sm:$0xff]
        %v364 = vld [vmem:[%s238 + $0x1f8] sm:$0xff]
        %v365 = vld [vmem:[%s238 + $0x200] sm:$0xff]
        %v366 = vld [vmem:[%s238 + $0x208] sm:$0xff]
        %v367 = vld [vmem:[%s238 + $0x210] sm:$0xff]
        %v368 = vld [vmem:[%s238 + $0x218] sm:$0xff]
        %v369 = vld [vmem:[%s238 + $0x220] sm:$0xff]
        %v370 = vld [vmem:[%s238 + $0x228] sm:$0xff]
        %v371 = vld [vmem:[%s238 + $0x230] sm:$0xff]
        %v372 = vld [vmem:[%s238 + $0x238] sm:$0xff]
        %v373 = vld [vmem:[%s238 + $0x240] sm:$0xff]
        %v374 = vld [vmem:[%s238 + $0x248] sm:$0xff]
        %v375 = vld [vmem:[%s238 + $0x250] sm:$0xff]
        %v376 = vld [vmem:[%s238 + $0x258] sm:$0xff]
        %v377 = vld [vmem:[%s238 + $0x260] sm:$0xff]
        %v378 = vld [vmem:[%s238 + $0x268] sm:$0xff]
        %v379 = vld [vmem:[%s238 + $0x270] sm:$0xff]
        %v380 = vld [vmem:[%s238 + $0x278] sm:$0xff]
        %v381 = vld [vmem:[%s238 + $0x280] sm:$0xff]
        %v382 = vld [vmem:[%s238 + $0x288] sm:$0xff]
        %v383 = vld [vmem:[%s238 + $0x290] sm:$0xff]
        %v384 = vld [vmem:[%s238 + $0x298] sm:$0xff]
        %v385 = vld [vmem:[%s238 + $0x2a0] sm:$0xff]
        %v386 = vld [vmem:[%s238 + $0x2a8] sm:$0xff]
        %v387 = vld [vmem:[%s238 + $0x2b0] sm:$0xff]
        %v388 = vld [vmem:[%s238 + $0x2b8] sm:$0xff]
        %v389 = vld [vmem:[%s238 + $0x2c0] sm:$0xff]
        %v390 = vld [vmem:[%s238 + $0x2c8] sm:$0xff]
        %v391 = vld [vmem:[%s238 + $0x2d0] sm:$0xff]
        %v392 = vld [vmem:[%s238 + $0x2d8] sm:$0xff]
        %v393 = vld [vmem:[%s238 + $0x2e0] sm:$0xff]
        %v394 = vld [vmem:[%s238 + $0x2e8] sm:$0xff]
        %v395 = vld [vmem:[%s238 + $0x2f0] sm:$0xff]
        %v396 = vld [vmem:[%s238 + $0x2f8] sm:$0xff]
        %v397 = vld [vmem:[%s238 + $0x300] sm:$0xff]
        %v398 = vld [vmem:[%s238 + $0x308] sm:$0xff]
        %v399 = vld [vmem:[%s238 + $0x310] sm:$0xff]
        %v400 = vld [vmem:[%s238 + $0x318] sm:$0xff]
        %v401 = vld [vmem:[%s238 + $0x320] sm:$0xff]
        %v402 = vld [vmem:[%s238 + $0x328] sm:$0xff]
        %v403 = vld [vmem:[%s238 + $0x330] sm:$0xff]
        %v404 = vld [vmem:[%s238 + $0x338] sm:$0xff]
        %v405 = vld [vmem:[%s238 + $0x340] sm:$0xff]
        %v406 = vld [vmem:[%s238 + $0x348] sm:$0xff]
        %v407 = vld [vmem:[%s238 + $0x350] sm:$0xff]
        %v408 = vld [vmem:[%s238 + $0x358] sm:$0xff]
        %v409 = vld [vmem:[%s238 + $0x360] sm:$0xff]
        %v410 = vld [vmem:[%s238 + $0x368] sm:$0xff]
        %v411 = vld [vmem:[%s238 + $0x370] sm:$0xff]
        %v412 = vld [vmem:[%s238 + $0x378] sm:$0xff]
        %v413 = vld [vmem:[%s238 + $0x380] sm:$0xff]
        %v414 = vld [vmem:[%s238 + $0x388] sm:$0xff]
        %v415 = vld [vmem:[%s238 + $0x390] sm:$0xff]
        %v416 = vld [vmem:[%s238 + $0x398] sm:$0xff]
        %v417 = vld [vmem:[%s238 + $0x3a0] sm:$0xff]
        %v418 = vld [vmem:[%s238 + $0x3a8] sm:$0xff]
        %v419 = vld [vmem:[%s238 + $0x3b0] sm:$0xff]
        %v420 = vld [vmem:[%s238 + $0x3b8] sm:$0xff]
        %v421 = vld [vmem:[%s238 + $0x3c0] sm:$0xff]
        %v422 = vld [vmem:[%s238 + $0x3c8] sm:$0xff]
        %v423 = vld [vmem:[%s238 + $0x3d0] sm:$0xff]
        %v424 = vld [vmem:[%s238 + $0x3d8] sm:$0xff]
        %v425 = vld [vmem:[%s238 + $0x3e0] sm:$0xff]
        %v426 = vld [vmem:[%s238 + $0x3e8] sm:$0xff]
        %v427 = vld [vmem:[%s238 + $0x3f0] sm:$0xff]
        %v428 = vld [vmem:[%s238 + $0x3f8] sm:$0xff]
        %v429 = vld [vmem:[%s238 + $0x400] sm:$0xff]
        %v430 = vld [vmem:[%s238 + $0x408] sm:$0xff]
        %v431 = vld [vmem:[%s238 + $0x410] sm:$0xff]
        %v432 = vld [vmem:[%s238 + $0x418] sm:$0xff]
        %v433 = vld [vmem:[%s238 + $0x420] sm:$0xff]
        %v434 = vld [vmem:[%s238 + $0x428] sm:$0xff]
        %v435 = vld [vmem:[%s238 + $0x430] sm:$0xff]
        %v436 = vld [vmem:[%s238 + $0x438] sm:$0xff]
        %v437 = vld [vmem:[%s238 + $0x440] sm:$0xff]
        %v438 = vld [vmem:[%s238 + $0x448] sm:$0xff]
        %v439 = vld [vmem:[%s238 + $0x450] sm:$0xff]
        %v440 = vld [vmem:[%s238 + $0x458] sm:$0xff]
        %v441 = vld [vmem:[%s238 + $0x460] sm:$0xff]
        %v442 = vld [vmem:[%s238 + $0x468] sm:$0xff]
        %v443 = vld [vmem:[%s238 + $0x470] sm:$0xff]
        %v444 = vld [vmem:[%s238 + $0x478] sm:$0xff]
        %v445 = vld [vmem:[%s238 + $0x480] sm:$0xff]
        %v446 = vld [vmem:[%s238 + $0x488] sm:$0xff]
        %v447 = vld [vmem:[%s238 + $0x490] sm:$0xff]
        %v448 = vld [vmem:[%s238 + $0x498] sm:$0xff]
        %v449 = vld [vmem:[%s238 + $0x4a0] sm:$0xff]
        %v450 = vld [vmem:[%s238 + $0x4a8] sm:$0xff]
        %v451 = vld [vmem:[%s238 + $0x4b0] sm:$0xff]
        %v452 = vld [vmem:[%s238 + $0x4b8] sm:$0xff]
        %v453 = vld [vmem:[%s238 + $0x4c0] sm:$0xff]
        %v454 = vld [vmem:[%s238 + $0x4c8] sm:$0xff]
        %v455 = vld [vmem:[%s238 + $0x4d0] sm:$0xff]
        %v456 = vld [vmem:[%s238 + $0x4d8] sm:$0xff]
        %v457 = vld [vmem:[%s238 + $0x4e0] sm:$0xff]
        %v458 = vld [vmem:[%s238 + $0x4e8] sm:$0xff]
        %v459 = vld [vmem:[%s238 + $0x4f0] sm:$0xff]
        %v460 = vld [vmem:[%s238 + $0x4f8] sm:$0xff]
        %v461 = vld [vmem:[%s238 + $0x500] sm:$0xff]
        %v462 = vld [vmem:[%s238 + $0x508] sm:$0xff]
        %v463 = vld [vmem:[%s238 + $0x510] sm:$0xff]
        %v464 = vld [vmem:[%s238 + $0x518] sm:$0xff]
        %v465 = vld [vmem:[%s238 + $0x520] sm:$0xff]
        %v466 = vld [vmem:[%s238 + $0x528] sm:$0xff]
        %v467 = vld [vmem:[%s238 + $0x530] sm:$0xff]
        %v468 = vld [vmem:[%s238 + $0x538] sm:$0xff]
        %v469 = vld [vmem:[%s238 + $0x540] sm:$0xff]
        %v470 = vld [vmem:[%s238 + $0x548] sm:$0xff]
        %v471 = vld [vmem:[%s238 + $0x550] sm:$0xff]
        %v472 = vld [vmem:[%s238 + $0x558] sm:$0xff]
        %v473 = vld [vmem:[%s238 + $0x560] sm:$0xff]
        %v474 = vld [vmem:[%s238 + $0x568] sm:$0xff]
        %v475 = vld [vmem:[%s238 + $0x570] sm:$0xff]
        %v476 = vld [vmem:[%s238 + $0x578] sm:$0xff]
        %v477 = vld [vmem:[%s238 + $0x580] sm:$0xff]
        %v478 = vld [vmem:[%s238 + $0x588] sm:$0xff]
        %v479 = vld [vmem:[%s238 + $0x590] sm:$0xff]
        %v480 = vld [vmem:[%s238 + $0x598] sm:$0xff]
        %v481 = vld [vmem:[%s238 + $0x5a0] sm:$0xff]
        %v482 = vld [vmem:[%s238 + $0x5a8] sm:$0xff]
        %v483 = vld [vmem:[%s238 + $0x5b0] sm:$0xff]
        %v484 = vld [vmem:[%s238 + $0x5b8] sm:$0xff]
        %v485 = vld [vmem:[%s238 + $0x5c0] sm:$0xff]
        %v486 = vld [vmem:[%s238 + $0x5c8] sm:$0xff]
        %v487 = vld [vmem:[%s238 + $0x5d0] sm:$0xff]
        %v488 = vld [vmem:[%s238 + $0x5d8] sm:$0xff]
        %v489 = vld [vmem:[%s238 + $0x5e0] sm:$0xff]
        %v490 = vld [vmem:[%s238 + $0x5e8] sm:$0xff]
        %v491 = vld [vmem:[%s238 + $0x5f0] sm:$0xff]
        %v492 = vld [vmem:[%s238 + $0x5f8] sm:$0xff]
        %v493 = vld [vmem:[%s238 + $0x600] sm:$0xff]
        %v494 = vld [vmem:[%s238 + $0x608] sm:$0xff]
        %v495 = vld [vmem:[%s238 + $0x610] sm:$0xff]
        %v496 = vld [vmem:[%s238 + $0x618] sm:$0xff]
        %v497 = vld [vmem:[%s238 + $0x620] sm:$0xff]
        %v498 = vld [vmem:[%s238 + $0x628] sm:$0xff]
        %v499 = vld [vmem:[%s238 + $0x630] sm:$0xff]
        %v500 = vld [vmem:[%s238 + $0x638] sm:$0xff]
        %v501 = vld [vmem:[%s238 + $0x640] sm:$0xff]
        %v502 = vld [vmem:[%s238 + $0x648] sm:$0xff]
        %v503 = vld [vmem:[%s238 + $0x650] sm:$0xff]
        %v504 = vld [vmem:[%s238 + $0x658] sm:$0xff]
        %v505 = vld [vmem:[%s238 + $0x660] sm:$0xff]
        %v506 = vld [vmem:[%s238 + $0x668] sm:$0xff]
        %v507 = vld [vmem:[%s238 + $0x670] sm:$0xff]
        %v508 = vld [vmem:[%s238 + $0x678] sm:$0xff]
        %v509 = vld [vmem:[%s238 + $0x680] sm:$0xff]
        %v510 = vld [vmem:[%s238 + $0x688] sm:$0xff]
        %v511 = vld [vmem:[%s238 + $0x690] sm:$0xff]
        %v512 = vld [vmem:[%s238 + $0x698] sm:$0xff]
        %v513 = vld [vmem:[%s238 + $0x6a0] sm:$0xff]
        %v514 = vld [vmem:[%s238 + $0x6a8] sm:$0xff]
        %v515 = vld [vmem:[%s238 + $0x6b0] sm:$0xff]
        %v516 = vld [vmem:[%s238 + $0x6b8] sm:$0xff]
        %v517 = vld [vmem:[%s238 + $0x6c0] sm:$0xff]
        %v518 = vld [vmem:[%s238 + $0x6c8] sm:$0xff]
        %v519 = vld [vmem:[%s238 + $0x6d0] sm:$0xff]
        %v520 = vld [vmem:[%s238 + $0x6d8] sm:$0xff]
        %v521 = vld [vmem:[%s238 + $0x6e0] sm:$0xff]
        %v522 = vld [vmem:[%s238 + $0x6e8] sm:$0xff]
        %v523 = vld [vmem:[%s238 + $0x6f0] sm:$0xff]
        %v524 = vld [vmem:[%s238 + $0x6f8] sm:$0xff]
        %v525 = vld [vmem:[%s238 + $0x700] sm:$0xff]
        %v526 = vld [vmem:[%s238 + $0x708] sm:$0xff]
        %v527 = vld [vmem:[%s238 + $0x710] sm:$0xff]
        %v528 = vld [vmem:[%s238 + $0x718] sm:$0xff]
        %v529 = vld [vmem:[%s238 + $0x720] sm:$0xff]
        %v530 = vld [vmem:[%s238 + $0x728] sm:$0xff]
        %v531 = vld [vmem:[%s238 + $0x730] sm:$0xff]
        %v532 = vld [vmem:[%s238 + $0x738] sm:$0xff]
        %v533 = vld [vmem:[%s238 + $0x740] sm:$0xff]
        %v534 = vld [vmem:[%s238 + $0x748] sm:$0xff]
        %v535 = vld [vmem:[%s238 + $0x750] sm:$0xff]
        %v536 = vld [vmem:[%s238 + $0x758] sm:$0xff]
        %v537 = vld [vmem:[%s238 + $0x760] sm:$0xff]
        %v538 = vld [vmem:[%s238 + $0x768] sm:$0xff]
        %v539 = vld [vmem:[%s238 + $0x770] sm:$0xff]
        %v540 = vld [vmem:[%s238 + $0x778] sm:$0xff]
        %v541 = vld [vmem:[%s238 + $0x780] sm:$0xff]
        %v542 = vld [vmem:[%s238 + $0x788] sm:$0xff]
        %v543 = vld [vmem:[%s238 + $0x790] sm:$0xff]
        %v544 = vld [vmem:[%s238 + $0x798] sm:$0xff]
        %v545 = vld [vmem:[%s238 + $0x7a0] sm:$0xff]
        %v546 = vld [vmem:[%s238 + $0x7a8] sm:$0xff]
        %v547 = vld [vmem:[%s238 + $0x7b0] sm:$0xff]
        %v548 = vld [vmem:[%s238 + $0x7b8] sm:$0xff]
        %v549 = vld [vmem:[%s238 + $0x7c0] sm:$0xff]
        %v550 = vld [vmem:[%s238 + $0x7c8] sm:$0xff]
        %v551 = vld [vmem:[%s238 + $0x7d0] sm:$0xff]
        %v552 = vld [vmem:[%s238 + $0x7d8] sm:$0xff]
        %v553 = vld [vmem:[%s238 + $0x7e0] sm:$0xff]
        %v554 = vld [vmem:[%s238 + $0x7e8] sm:$0xff]
        %v555 = vld [vmem:[%s238 + $0x7f0] sm:$0xff]
        %v556 = vld [vmem:[%s238 + $0x7f8] sm:$0xff]
        %v559 = vunpack.c.l.b16 %v299
        %v560 = vunpack.c.h.b16 %v299
        %v561 = vunpack.c.l.b16 %v300
        %v562 = vunpack.c.h.b16 %v300
        %v563 = vpack.c.b16 %v559, %v559
        %v564 = vpack.c.b16 %v560, %v560
        %v565 = vpack.c.b16 %v561, %v561
        %v566 = vpack.c.b16 %v562, %v562
        %v827 = vunpack.c.l.b16 %v301
        %v828 = vunpack.c.h.b16 %v301
        %v829 = vunpack.c.l.b16 %v302
        %v830 = vunpack.c.h.b16 %v302
        %v831 = vunpack.c.l.b16 %v303
        %v832 = vunpack.c.h.b16 %v303
        %v833 = vunpack.c.l.b16 %v304
        %v834 = vunpack.c.h.b16 %v304
        %v835 = vunpack.c.l.b16 %v305
        %v836 = vunpack.c.h.b16 %v305
        %v837 = vunpack.c.l.b16 %v306
        %v838 = vunpack.c.h.b16 %v306
        %v839 = vunpack.c.l.b16 %v307
        %v840 = vunpack.c.h.b16 %v307
        %v841 = vunpack.c.l.b16 %v308
        %v842 = vunpack.c.h.b16 %v308
        %v843 = vunpack.c.l.b16 %v309
        %v844 = vunpack.c.h.b16 %v309
        %v845 = vunpack.c.l.b16 %v310
        %v846 = vunpack.c.h.b16 %v310
        %v847 = vunpack.c.l.b16 %v311
        %v848 = vunpack.c.h.b16 %v311
        %v849 = vunpack.c.l.b16 %v312
        %v850 = vunpack.c.h.b16 %v312
        %v851 = vunpack.c.l.b16 %v313
        %v852 = vunpack.c.h.b16 %v313
        %v853 = vunpack.c.l.b16 %v314
        %v854 = vunpack.c.h.b16 %v314
        %v855 = vunpack.c.l.b16 %v315
        %v856 = vunpack.c.h.b16 %v315
        %v857 = vunpack.c.l.b16 %v316
        %v858 = vunpack.c.h.b16 %v316
        %v859 = vunpack.c.l.b16 %v317
        %v860 = vunpack.c.h.b16 %v317
        %v861 = vunpack.c.l.b16 %v318
        %v862 = vunpack.c.h.b16 %v318
        %v863 = vunpack.c.l.b16 %v319
        %v864 = vunpack.c.h.b16 %v319
        %v865 = vunpack.c.l.b16 %v320
        %v866 = vunpack.c.h.b16 %v320
        %v867 = vunpack.c.l.b16 %v321
        %v868 = vunpack.c.h.b16 %v321
        %v869 = vunpack.c.l.b16 %v322
        %v870 = vunpack.c.h.b16 %v322
        %v871 = vunpack.c.l.b16 %v323
        %v872 = vunpack.c.h.b16 %v323
        %v873 = vunpack.c.l.b16 %v324
        %v874 = vunpack.c.h.b16 %v324
        %v875 = vunpack.c.l.b16 %v325
        %v876 = vunpack.c.h.b16 %v325
        %v877 = vunpack.c.l.b16 %v326
        %v878 = vunpack.c.h.b16 %v326
        %v879 = vunpack.c.l.b16 %v327
        %v880 = vunpack.c.h.b16 %v327
        %v881 = vunpack.c.l.b16 %v328
        %v882 = vunpack.c.h.b16 %v328
        %v883 = vunpack.c.l.b16 %v329
        %v884 = vunpack.c.h.b16 %v329
        %v885 = vunpack.c.l.b16 %v330
        %v886 = vunpack.c.h.b16 %v330
        %v887 = vunpack.c.l.b16 %v331
        %v888 = vunpack.c.h.b16 %v331
        %v889 = vunpack.c.l.b16 %v332
        %v890 = vunpack.c.h.b16 %v332
        %v891 = vunpack.c.l.b16 %v333
        %v892 = vunpack.c.h.b16 %v333
        %v893 = vunpack.c.l.b16 %v334
        %v894 = vunpack.c.h.b16 %v334
        %v895 = vunpack.c.l.b16 %v335
        %v896 = vunpack.c.h.b16 %v335
        %v897 = vunpack.c.l.b16 %v336
        %v898 = vunpack.c.h.b16 %v336
        %v899 = vunpack.c.l.b16 %v337
        %v900 = vunpack.c.h.b16 %v337
        %v901 = vunpack.c.l.b16 %v338
        %v902 = vunpack.c.h.b16 %v338
        %v903 = vunpack.c.l.b16 %v339
        %v904 = vunpack.c.h.b16 %v339
        %v905 = vunpack.c.l.b16 %v340
        %v906 = vunpack.c.h.b16 %v340
        %v907 = vunpack.c.l.b16 %v341
        %v908 = vunpack.c.h.b16 %v341
        %v909 = vunpack.c.l.b16 %v342
        %v910 = vunpack.c.h.b16 %v342
        %v911 = vunpack.c.l.b16 %v343
        %v912 = vunpack.c.h.b16 %v343
        %v913 = vunpack.c.l.b16 %v344
        %v914 = vunpack.c.h.b16 %v344
        %v915 = vunpack.c.l.b16 %v345
        %v916 = vunpack.c.h.b16 %v345
        %v917 = vunpack.c.l.b16 %v346
        %v918 = vunpack.c.h.b16 %v346
        %v919 = vunpack.c.l.b16 %v347
        %v920 = vunpack.c.h.b16 %v347
        %v921 = vunpack.c.l.b16 %v348
        %v922 = vunpack.c.h.b16 %v348
        %v923 = vunpack.c.l.b16 %v349
        %v924 = vunpack.c.h.b16 %v349
        %v925 = vunpack.c.l.b16 %v350
        %v926 = vunpack.c.h.b16 %v350
        %v927 = vunpack.c.l.b16 %v351
        %v928 = vunpack.c.h.b16 %v351
        %v929 = vunpack.c.l.b16 %v352
        %v930 = vunpack.c.h.b16 %v352
        %v931 = vunpack.c.l.b16 %v353
        %v932 = vunpack.c.h.b16 %v353
        %v933 = vunpack.c.l.b16 %v354
        %v934 = vunpack.c.h.b16 %v354
        %v935 = vunpack.c.l.b16 %v355
        %v936 = vunpack.c.h.b16 %v355
        %v937 = vunpack.c.l.b16 %v356
        %v938 = vunpack.c.h.b16 %v356
        %v939 = vunpack.c.l.b16 %v357
        %v940 = vunpack.c.h.b16 %v357
        %v941 = vunpack.c.l.b16 %v358
        %v942 = vunpack.c.h.b16 %v358
        %v943 = vunpack.c.l.b16 %v359
        %v944 = vunpack.c.h.b16 %v359
        %v945 = vunpack.c.l.b16 %v360
        %v946 = vunpack.c.h.b16 %v360
        %v947 = vunpack.c.l.b16 %v361
        %v948 = vunpack.c.h.b16 %v361
        %v949 = vunpack.c.l.b16 %v362
        %v950 = vunpack.c.h.b16 %v362
        %v951 = vunpack.c.l.b16 %v363
        %v952 = vunpack.c.h.b16 %v363
        %v953 = vunpack.c.l.b16 %v364
        %v954 = vunpack.c.h.b16 %v364
        %v955 = vunpack.c.l.b16 %v365
        %v956 = vunpack.c.h.b16 %v365
        %v957 = vunpack.c.l.b16 %v366
        %v958 = vunpack.c.h.b16 %v366
        %v959 = vunpack.c.l.b16 %v367
        %v960 = vunpack.c.h.b16 %v367
        %v961 = vunpack.c.l.b16 %v368
        %v962 = vunpack.c.h.b16 %v368
        %v963 = vunpack.c.l.b16 %v369
        %v964 = vunpack.c.h.b16 %v369
        %v965 = vunpack.c.l.b16 %v370
        %v966 = vunpack.c.h.b16 %v370
        %v967 = vunpack.c.l.b16 %v371
        %v968 = vunpack.c.h.b16 %v371
        %v969 = vunpack.c.l.b16 %v372
        %v970 = vunpack.c.h.b16 %v372
        %v971 = vunpack.c.l.b16 %v373
        %v972 = vunpack.c.h.b16 %v373
        %v973 = vunpack.c.l.b16 %v374
        %v974 = vunpack.c.h.b16 %v374
        %v975 = vunpack.c.l.b16 %v375
        %v976 = vunpack.c.h.b16 %v375
        %v977 = vunpack.c.l.b16 %v376
        %v978 = vunpack.c.h.b16 %v376
        %v979 = vunpack.c.l.b16 %v377
        %v980 = vunpack.c.h.b16 %v377
        %v981 = vunpack.c.l.b16 %v378
        %v982 = vunpack.c.h.b16 %v378
        %v983 = vunpack.c.l.b16 %v379
        %v984 = vunpack.c.h.b16 %v379
        %v985 = vunpack.c.l.b16 %v380
        %v986 = vunpack.c.h.b16 %v380
        %v987 = vunpack.c.l.b16 %v381
        %v988 = vunpack.c.h.b16 %v381
        %v989 = vunpack.c.l.b16 %v382
        %v990 = vunpack.c.h.b16 %v382
        %v991 = vunpack.c.l.b16 %v383
        %v992 = vunpack.c.h.b16 %v383
        %v993 = vunpack.c.l.b16 %v384
        %v994 = vunpack.c.h.b16 %v384
        %v995 = vunpack.c.l.b16 %v385
        %v996 = vunpack.c.h.b16 %v385
        %v997 = vunpack.c.l.b16 %v386
        %v998 = vunpack.c.h.b16 %v386
        %v999 = vunpack.c.l.b16 %v387
        %v1000 = vunpack.c.h.b16 %v387
        %v1001 = vunpack.c.l.b16 %v388
        %v1002 = vunpack.c.h.b16 %v388
        %v1003 = vunpack.c.l.b16 %v389
        %v1004 = vunpack.c.h.b16 %v389
        %v1005 = vunpack.c.l.b16 %v390
        %v1006 = vunpack.c.h.b16 %v390
        %v1007 = vunpack.c.l.b16 %v391
        %v1008 = vunpack.c.h.b16 %v391
        %v1009 = vunpack.c.l.b16 %v392
        %v1010 = vunpack.c.h.b16 %v392
        %v1011 = vunpack.c.l.b16 %v393
        %v1012 = vunpack.c.h.b16 %v393
        %v1013 = vunpack.c.l.b16 %v394
        %v1014 = vunpack.c.h.b16 %v394
        %v1015 = vunpack.c.l.b16 %v395
        %v1016 = vunpack.c.h.b16 %v395
        %v1017 = vunpack.c.l.b16 %v396
        %v1018 = vunpack.c.h.b16 %v396
        %v1019 = vunpack.c.l.b16 %v397
        %v1020 = vunpack.c.h.b16 %v397
        %v1021 = vunpack.c.l.b16 %v398
        %v1022 = vunpack.c.h.b16 %v398
        %v1023 = vunpack.c.l.b16 %v399
        %v1024 = vunpack.c.h.b16 %v399
        %v1025 = vunpack.c.l.b16 %v400
        %v1026 = vunpack.c.h.b16 %v400
        %v1027 = vunpack.c.l.b16 %v401
        %v1028 = vunpack.c.h.b16 %v401
        %v1029 = vunpack.c.l.b16 %v402
        %v1030 = vunpack.c.h.b16 %v402
        %v1031 = vunpack.c.l.b16 %v403
        %v1032 = vunpack.c.h.b16 %v403
        %v1033 = vunpack.c.l.b16 %v404
        %v1034 = vunpack.c.h.b16 %v404
        %v1035 = vunpack.c.l.b16 %v405
        %v1036 = vunpack.c.h.b16 %v405
        %v1037 = vunpack.c.l.b16 %v406
        %v1038 = vunpack.c.h.b16 %v406
        %v1039 = vunpack.c.l.b16 %v407
        %v1040 = vunpack.c.h.b16 %v407
        %v1041 = vunpack.c.l.b16 %v408
        %v1042 = vunpack.c.h.b16 %v408
        %v1043 = vunpack.c.l.b16 %v409
        %v1044 = vunpack.c.h.b16 %v409
        %v1045 = vunpack.c.l.b16 %v410
        %v1046 = vunpack.c.h.b16 %v410
        %v1047 = vunpack.c.l.b16 %v411
        %v1048 = vunpack.c.h.b16 %v411
        %v1049 = vunpack.c.l.b16 %v412
        %v1050 = vunpack.c.h.b16 %v412
        %v1051 = vunpack.c.l.b16 %v413
        %v1052 = vunpack.c.h.b16 %v413
        %v1053 = vunpack.c.l.b16 %v414
        %v1054 = vunpack.c.h.b16 %v414
        %v1055 = vunpack.c.l.b16 %v415
        %v1056 = vunpack.c.h.b16 %v415
        %v1057 = vunpack.c.l.b16 %v416
        %v1058 = vunpack.c.h.b16 %v416
        %v1059 = vunpack.c.l.b16 %v417
        %v1060 = vunpack.c.h.b16 %v417
        %v1061 = vunpack.c.l.b16 %v418
        %v1062 = vunpack.c.h.b16 %v418
        %v1063 = vunpack.c.l.b16 %v419
        %v1064 = vunpack.c.h.b16 %v419
        %v1065 = vunpack.c.l.b16 %v420
        %v1066 = vunpack.c.h.b16 %v420
        %v1067 = vunpack.c.l.b16 %v421
        %v1068 = vunpack.c.h.b16 %v421
        %v1069 = vunpack.c.l.b16 %v422
        %v1070 = vunpack.c.h.b16 %v422
        %v1071 = vunpack.c.l.b16 %v423
        %v1072 = vunpack.c.h.b16 %v423
        %v1073 = vunpack.c.l.b16 %v424
        %v1074 = vunpack.c.h.b16 %v424
        %v1075 = vunpack.c.l.b16 %v425
        %v1076 = vunpack.c.h.b16 %v425
        %v1077 = vunpack.c.l.b16 %v426
        %v1078 = vunpack.c.h.b16 %v426
        %v1079 = vunpack.c.l.b16 %v427
        %v1080 = vunpack.c.h.b16 %v427
        %v1081 = vunpack.c.l.b16 %v428
        %v1082 = vunpack.c.h.b16 %v428
        %v1083 = vunpack.c.l.b16 %v429
        %v1084 = vunpack.c.h.b16 %v429
        %v1085 = vunpack.c.l.b16 %v430
        %v1086 = vunpack.c.h.b16 %v430
        %v1087 = vunpack.c.l.b16 %v431
        %v1088 = vunpack.c.h.b16 %v431
        %v1089 = vunpack.c.l.b16 %v432
        %v1090 = vunpack.c.h.b16 %v432
        %v1091 = vunpack.c.l.b16 %v433
        %v1092 = vunpack.c.h.b16 %v433
        %v1093 = vunpack.c.l.b16 %v434
        %v1094 = vunpack.c.h.b16 %v434
        %v1095 = vunpack.c.l.b16 %v435
        %v1096 = vunpack.c.h.b16 %v435
        %v1097 = vunpack.c.l.b16 %v436
        %v1098 = vunpack.c.h.b16 %v436
        %v1099 = vunpack.c.l.b16 %v437
        %v1100 = vunpack.c.h.b16 %v437
        %v1101 = vunpack.c.l.b16 %v438
        %v1102 = vunpack.c.h.b16 %v438
        %v1103 = vunpack.c.l.b16 %v439
        %v1104 = vunpack.c.h.b16 %v439
        %v1105 = vunpack.c.l.b16 %v440
        %v1106 = vunpack.c.h.b16 %v440
        %v1107 = vunpack.c.l.b16 %v441
        %v1108 = vunpack.c.h.b16 %v441
        %v1109 = vunpack.c.l.b16 %v442
        %v1110 = vunpack.c.h.b16 %v442
        %v1111 = vunpack.c.l.b16 %v443
        %v1112 = vunpack.c.h.b16 %v443
        %v1113 = vunpack.c.l.b16 %v444
        %v1114 = vunpack.c.h.b16 %v444
        %v1115 = vunpack.c.l.b16 %v445
        %v1116 = vunpack.c.h.b16 %v445
        %v1117 = vunpack.c.l.b16 %v446
        %v1118 = vunpack.c.h.b16 %v446
        %v1119 = vunpack.c.l.b16 %v447
        %v1120 = vunpack.c.h.b16 %v447
        %v1121 = vunpack.c.l.b16 %v448
        %v1122 = vunpack.c.h.b16 %v448
        %v1123 = vunpack.c.l.b16 %v449
        %v1124 = vunpack.c.h.b16 %v449
        %v1125 = vunpack.c.l.b16 %v450
        %v1126 = vunpack.c.h.b16 %v450
        %v1127 = vunpack.c.l.b16 %v451
        %v1128 = vunpack.c.h.b16 %v451
        %v1129 = vunpack.c.l.b16 %v452
        %v1130 = vunpack.c.h.b16 %v452
        %v1131 = vunpack.c.l.b16 %v453
        %v1132 = vunpack.c.h.b16 %v453
        %v1133 = vunpack.c.l.b16 %v454
        %v1134 = vunpack.c.h.b16 %v454
        %v1135 = vunpack.c.l.b16 %v455
        %v1136 = vunpack.c.h.b16 %v455
        %v1137 = vunpack.c.l.b16 %v456
        %v1138 = vunpack.c.h.b16 %v456
        %v1139 = vunpack.c.l.b16 %v457
        %v1140 = vunpack.c.h.b16 %v457
        %v1141 = vunpack.c.l.b16 %v458
        %v1142 = vunpack.c.h.b16 %v458
        %v1143 = vunpack.c.l.b16 %v459
        %v1144 = vunpack.c.h.b16 %v459
        %v1145 = vunpack.c.l.b16 %v460
        %v1146 = vunpack.c.h.b16 %v460
        %v1147 = vunpack.c.l.b16 %v461
        %v1148 = vunpack.c.h.b16 %v461
        %v1149 = vunpack.c.l.b16 %v462
        %v1150 = vunpack.c.h.b16 %v462
        %v1151 = vunpack.c.l.b16 %v463
        %v1152 = vunpack.c.h.b16 %v463
        %v1153 = vunpack.c.l.b16 %v464
        %v1154 = vunpack.c.h.b16 %v464
        %v1155 = vunpack.c.l.b16 %v465
        %v1156 = vunpack.c.h.b16 %v465
        %v1157 = vunpack.c.l.b16 %v466
        %v1158 = vunpack.c.h.b16 %v466
        %v1159 = vunpack.c.l.b16 %v467
        %v1160 = vunpack.c.h.b16 %v467
        %v1161 = vunpack.c.l.b16 %v468
        %v1162 = vunpack.c.h.b16 %v468
        %v1163 = vunpack.c.l.b16 %v469
        %v1164 = vunpack.c.h.b16 %v469
        %v1165 = vunpack.c.l.b16 %v470
        %v1166 = vunpack.c.h.b16 %v470
        %v1167 = vunpack.c.l.b16 %v471
        %v1168 = vunpack.c.h.b16 %v471
        %v1169 = vunpack.c.l.b16 %v472
        %v1170 = vunpack.c.h.b16 %v472
        %v1171 = vunpack.c.l.b16 %v473
        %v1172 = vunpack.c.h.b16 %v473
        %v1173 = vunpack.c.l.b16 %v474
        %v1174 = vunpack.c.h.b16 %v474
        %v1175 = vunpack.c.l.b16 %v475
        %v1176 = vunpack.c.h.b16 %v475
        %v1177 = vunpack.c.l.b16 %v476
        %v1178 = vunpack.c.h.b16 %v476
        %v1179 = vunpack.c.l.b16 %v477
        %v1180 = vunpack.c.h.b16 %v477
        %v1181 = vunpack.c.l.b16 %v478
        %v1182 = vunpack.c.h.b16 %v478
        %v1183 = vunpack.c.l.b16 %v479
        %v1184 = vunpack.c.h.b16 %v479
        %v1185 = vunpack.c.l.b16 %v480
        %v1186 = vunpack.c.h.b16 %v480
        %v1187 = vunpack.c.l.b16 %v481
        %v1188 = vunpack.c.h.b16 %v481
        %v1189 = vunpack.c.l.b16 %v482
        %v1190 = vunpack.c.h.b16 %v482
        %v1191 = vunpack.c.l.b16 %v483
        %v1192 = vunpack.c.h.b16 %v483
        %v1193 = vunpack.c.l.b16 %v484
        %v1194 = vunpack.c.h.b16 %v484
        %v1195 = vunpack.c.l.b16 %v485
        %v1196 = vunpack.c.h.b16 %v485
        %v1197 = vunpack.c.l.b16 %v486
        %v1198 = vunpack.c.h.b16 %v486
        %v1199 = vunpack.c.l.b16 %v487
        %v1200 = vunpack.c.h.b16 %v487
        %v1201 = vunpack.c.l.b16 %v488
        %v1202 = vunpack.c.h.b16 %v488
        %v1203 = vunpack.c.l.b16 %v489
        %v1204 = vunpack.c.h.b16 %v489
        %v1205 = vunpack.c.l.b16 %v490
        %v1206 = vunpack.c.h.b16 %v490
        %v1207 = vunpack.c.l.b16 %v491
        %v1208 = vunpack.c.h.b16 %v491
        %v1209 = vunpack.c.l.b16 %v492
        %v1210 = vunpack.c.h.b16 %v492
        %v1211 = vunpack.c.l.b16 %v493
        %v1212 = vunpack.c.h.b16 %v493
        %v1213 = vunpack.c.l.b16 %v494
        %v1214 = vunpack.c.h.b16 %v494
        %v1215 = vunpack.c.l.b16 %v495
        %v1216 = vunpack.c.h.b16 %v495
        %v1217 = vunpack.c.l.b16 %v496
        %v1218 = vunpack.c.h.b16 %v496
        %v1219 = vunpack.c.l.b16 %v497
        %v1220 = vunpack.c.h.b16 %v497
        %v1221 = vunpack.c.l.b16 %v498
        %v1222 = vunpack.c.h.b16 %v498
        %v1223 = vunpack.c.l.b16 %v499
        %v1224 = vunpack.c.h.b16 %v499
        %v1225 = vunpack.c.l.b16 %v500
        %v1226 = vunpack.c.h.b16 %v500
        %v1227 = vunpack.c.l.b16 %v501
        %v1228 = vunpack.c.h.b16 %v501
        %v1229 = vunpack.c.l.b16 %v502
        %v1230 = vunpack.c.h.b16 %v502
        %v1231 = vunpack.c.l.b16 %v503
        %v1232 = vunpack.c.h.b16 %v503
        %v1233 = vunpack.c.l.b16 %v504
        %v1234 = vunpack.c.h.b16 %v504
        %v1235 = vunpack.c.l.b16 %v505
        %v1236 = vunpack.c.h.b16 %v505
        %v1237 = vunpack.c.l.b16 %v506
        %v1238 = vunpack.c.h.b16 %v506
        %v1239 = vunpack.c.l.b16 %v507
        %v1240 = vunpack.c.h.b16 %v507
        %v1241 = vunpack.c.l.b16 %v508
        %v1242 = vunpack.c.h.b16 %v508
        %v1243 = vunpack.c.l.b16 %v509
        %v1244 = vunpack.c.h.b16 %v509
        %v1245 = vunpack.c.l.b16 %v510
        %v1246 = vunpack.c.h.b16 %v510
        %v1247 = vunpack.c.l.b16 %v511
        %v1248 = vunpack.c.h.b16 %v511
        %v1249 = vunpack.c.l.b16 %v512
        %v1250 = vunpack.c.h.b16 %v512
        %v1251 = vunpack.c.l.b16 %v513
        %v1252 = vunpack.c.h.b16 %v513
        %v1253 = vunpack.c.l.b16 %v514
        %v1254 = vunpack.c.h.b16 %v514
        %v1255 = vunpack.c.l.b16 %v515
        %v1256 = vunpack.c.h.b16 %v515
        %v1257 = vunpack.c.l.b16 %v516
        %v1258 = vunpack.c.h.b16 %v516
        %v1259 = vunpack.c.l.b16 %v517
        %v1260 = vunpack.c.h.b16 %v517
        %v1261 = vunpack.c.l.b16 %v518
        %v1262 = vunpack.c.h.b16 %v518
        %v1263 = vunpack.c.l.b16 %v519
        %v1264 = vunpack.c.h.b16 %v519
        %v1265 = vunpack.c.l.b16 %v520
        %v1266 = vunpack.c.h.b16 %v520
        %v1267 = vunpack.c.l.b16 %v521
        %v1268 = vunpack.c.h.b16 %v521
        %v1269 = vunpack.c.l.b16 %v522
        %v1270 = vunpack.c.h.b16 %v522
        %v1271 = vunpack.c.l.b16 %v523
        %v1272 = vunpack.c.h.b16 %v523
        %v1273 = vunpack.c.l.b16 %v524
        %v1274 = vunpack.c.h.b16 %v524
        %v1275 = vunpack.c.l.b16 %v525
        %v1276 = vunpack.c.h.b16 %v525
        %v1277 = vunpack.c.l.b16 %v526
        %v1278 = vunpack.c.h.b16 %v526
        %v1279 = vunpack.c.l.b16 %v527
        %v1280 = vunpack.c.h.b16 %v527
        %v1281 = vunpack.c.l.b16 %v528
        %v1282 = vunpack.c.h.b16 %v528
        %v1283 = vunpack.c.l.b16 %v529
        %v1284 = vunpack.c.h.b16 %v529
        %v1285 = vunpack.c.l.b16 %v530
        %v1286 = vunpack.c.h.b16 %v530
        %v1287 = vunpack.c.l.b16 %v531
        %v1288 = vunpack.c.h.b16 %v531
        %v1289 = vunpack.c.l.b16 %v532
        %v1290 = vunpack.c.h.b16 %v532
        %v1291 = vunpack.c.l.b16 %v533
        %v1292 = vunpack.c.h.b16 %v533
        %v1293 = vunpack.c.l.b16 %v534
        %v1294 = vunpack.c.h.b16 %v534
        %v1295 = vunpack.c.l.b16 %v535
        %v1296 = vunpack.c.h.b16 %v535
        %v1297 = vunpack.c.l.b16 %v536
        %v1298 = vunpack.c.h.b16 %v536
        %v1299 = vunpack.c.l.b16 %v537
        %v1300 = vunpack.c.h.b16 %v537
        %v1301 = vunpack.c.l.b16 %v538
        %v1302 = vunpack.c.h.b16 %v538
        %v1303 = vunpack.c.l.b16 %v539
        %v1304 = vunpack.c.h.b16 %v539
        %v1305 = vunpack.c.l.b16 %v540
        %v1306 = vunpack.c.h.b16 %v540
        %v1307 = vunpack.c.l.b16 %v541
        %v1308 = vunpack.c.h.b16 %v541
        %v1309 = vunpack.c.l.b16 %v542
        %v1310 = vunpack.c.h.b16 %v542
        %v1311 = vunpack.c.l.b16 %v543
        %v1312 = vunpack.c.h.b16 %v543
        %v1313 = vunpack.c.l.b16 %v544
        %v1314 = vunpack.c.h.b16 %v544
        %v1315 = vunpack.c.l.b16 %v545
        %v1316 = vunpack.c.h.b16 %v545
        %v1317 = vunpack.c.l.b16 %v546
        %v1318 = vunpack.c.h.b16 %v546
        %v1319 = vunpack.c.l.b16 %v547
        %v1320 = vunpack.c.h.b16 %v547
        %v1321 = vunpack.c.l.b16 %v548
        %v1322 = vunpack.c.h.b16 %v548
        %v1323 = vunpack.c.l.b16 %v549
        %v1324 = vunpack.c.h.b16 %v549
        %v1325 = vunpack.c.l.b16 %v550
        %v1326 = vunpack.c.h.b16 %v550
        %v1327 = vunpack.c.l.b16 %v551
        %v1328 = vunpack.c.h.b16 %v551
        %v1329 = vunpack.c.l.b16 %v552
        %v1330 = vunpack.c.h.b16 %v552
        %v1331 = vunpack.c.l.b16 %v553
        %v1332 = vunpack.c.h.b16 %v553
        %v1333 = vunpack.c.l.b16 %v554
        %v1334 = vunpack.c.h.b16 %v554
        %v1335 = vunpack.c.l.b16 %v555
        %v1336 = vunpack.c.h.b16 %v555
        %v1337 = vunpack.c.l.b16 %v556
        %v1338 = vunpack.c.h.b16 %v556
        %v1339 = vpack.c.b16 %v835, %v827
        %v1340 = vpack.c.b16 %v836, %v828
        %v1341 = vpack.c.b16 %v837, %v829
        %v1342 = vpack.c.b16 %v838, %v830
        %v1343 = vpack.c.b16 %v839, %v831
        %v1344 = vpack.c.b16 %v840, %v832
        %v1345 = vpack.c.b16 %v841, %v833
        %v1346 = vpack.c.b16 %v842, %v834
        %v1347 = vpack.c.b16 %v851, %v843
        %v1348 = vpack.c.b16 %v852, %v844
        %v1349 = vpack.c.b16 %v853, %v845
        %v1350 = vpack.c.b16 %v854, %v846
        %v1351 = vpack.c.b16 %v855, %v847
        %v1352 = vpack.c.b16 %v856, %v848
        %v1353 = vpack.c.b16 %v857, %v849
        %v1354 = vpack.c.b16 %v858, %v850
        %v1355 = vpack.c.b16 %v867, %v859
        %v1356 = vpack.c.b16 %v868, %v860
        %v1357 = vpack.c.b16 %v869, %v861
        %v1358 = vpack.c.b16 %v870, %v862
        %v1359 = vpack.c.b16 %v871, %v863
        %v1360 = vpack.c.b16 %v872, %v864
        %v1361 = vpack.c.b16 %v873, %v865
        %v1362 = vpack.c.b16 %v874, %v866
        %v1363 = vpack.c.b16 %v883, %v875
        %v1364 = vpack.c.b16 %v884, %v876
        %v1365 = vpack.c.b16 %v885, %v877
        %v1366 = vpack.c.b16 %v886, %v878
        %v1367 = vpack.c.b16 %v887, %v879
        %v1368 = vpack.c.b16 %v888, %v880
        %v1369 = vpack.c.b16 %v889, %v881
        %v1370 = vpack.c.b16 %v890, %v882
        %v1371 = vpack.c.b16 %v899, %v891
        %v1372 = vpack.c.b16 %v900, %v892
        %v1373 = vpack.c.b16 %v901, %v893
        %v1374 = vpack.c.b16 %v902, %v894
        %v1375 = vpack.c.b16 %v903, %v895
        %v1376 = vpack.c.b16 %v904, %v896
        %v1377 = vpack.c.b16 %v905, %v897
        %v1378 = vpack.c.b16 %v906, %v898
        %v1379 = vpack.c.b16 %v915, %v907
        %v1380 = vpack.c.b16 %v916, %v908
        %v1381 = vpack.c.b16 %v917, %v909
        %v1382 = vpack.c.b16 %v918, %v910
        %v1383 = vpack.c.b16 %v919, %v911
        %v1384 = vpack.c.b16 %v920, %v912
        %v1385 = vpack.c.b16 %v921, %v913
        %v1386 = vpack.c.b16 %v922, %v914
        %v1387 = vpack.c.b16 %v931, %v923
        %v1388 = vpack.c.b16 %v932, %v924
        %v1389 = vpack.c.b16 %v933, %v925
        %v1390 = vpack.c.b16 %v934, %v926
        %v1391 = vpack.c.b16 %v935, %v927
        %v1392 = vpack.c.b16 %v936, %v928
        %v1393 = vpack.c.b16 %v937, %v929
        %v1394 = vpack.c.b16 %v938, %v930
        %v1395 = vpack.c.b16 %v947, %v939
        %v1396 = vpack.c.b16 %v948, %v940
        %v1397 = vpack.c.b16 %v949, %v941
        %v1398 = vpack.c.b16 %v950, %v942
        %v1399 = vpack.c.b16 %v951, %v943
        %v1400 = vpack.c.b16 %v952, %v944
        %v1401 = vpack.c.b16 %v953, %v945
        %v1402 = vpack.c.b16 %v954, %v946
        %v1403 = vpack.c.b16 %v963, %v955
        %v1404 = vpack.c.b16 %v964, %v956
        %v1405 = vpack.c.b16 %v965, %v957
        %v1406 = vpack.c.b16 %v966, %v958
        %v1407 = vpack.c.b16 %v967, %v959
        %v1408 = vpack.c.b16 %v968, %v960
        %v1409 = vpack.c.b16 %v969, %v961
        %v1410 = vpack.c.b16 %v970, %v962
        %v1411 = vpack.c.b16 %v979, %v971
        %v1412 = vpack.c.b16 %v980, %v972
        %v1413 = vpack.c.b16 %v981, %v973
        %v1414 = vpack.c.b16 %v982, %v974
        %v1415 = vpack.c.b16 %v983, %v975
        %v1416 = vpack.c.b16 %v984, %v976
        %v1417 = vpack.c.b16 %v985, %v977
        %v1418 = vpack.c.b16 %v986, %v978
        %v1419 = vpack.c.b16 %v995, %v987
        %v1420 = vpack.c.b16 %v996, %v988
        %v1421 = vpack.c.b16 %v997, %v989
        %v1422 = vpack.c.b16 %v998, %v990
        %v1423 = vpack.c.b16 %v999, %v991
        %v1424 = vpack.c.b16 %v1000, %v992
        %v1425 = vpack.c.b16 %v1001, %v993
        %v1426 = vpack.c.b16 %v1002, %v994
        %v1427 = vpack.c.b16 %v1011, %v1003
        %v1428 = vpack.c.b16 %v1012, %v1004
        %v1429 = vpack.c.b16 %v1013, %v1005
        %v1430 = vpack.c.b16 %v1014, %v1006
        %v1431 = vpack.c.b16 %v1015, %v1007
        %v1432 = vpack.c.b16 %v1016, %v1008
        %v1433 = vpack.c.b16 %v1017, %v1009
        %v1434 = vpack.c.b16 %v1018, %v1010
        %v1435 = vpack.c.b16 %v1027, %v1019
        %v1436 = vpack.c.b16 %v1028, %v1020
        %v1437 = vpack.c.b16 %v1029, %v1021
        %v1438 = vpack.c.b16 %v1030, %v1022
        %v1439 = vpack.c.b16 %v1031, %v1023
        %v1440 = vpack.c.b16 %v1032, %v1024
        %v1441 = vpack.c.b16 %v1033, %v1025
        %v1442 = vpack.c.b16 %v1034, %v1026
        %v1443 = vpack.c.b16 %v1043, %v1035
        %v1444 = vpack.c.b16 %v1044, %v1036
        %v1445 = vpack.c.b16 %v1045, %v1037
        %v1446 = vpack.c.b16 %v1046, %v1038
        %v1447 = vpack.c.b16 %v1047, %v1039
        %v1448 = vpack.c.b16 %v1048, %v1040
        %v1449 = vpack.c.b16 %v1049, %v1041
        %v1450 = vpack.c.b16 %v1050, %v1042
        %v1451 = vpack.c.b16 %v1059, %v1051
        %v1452 = vpack.c.b16 %v1060, %v1052
        %v1453 = vpack.c.b16 %v1061, %v1053
        %v1454 = vpack.c.b16 %v1062, %v1054
        %v1455 = vpack.c.b16 %v1063, %v1055
        %v1456 = vpack.c.b16 %v1064, %v1056
        %v1457 = vpack.c.b16 %v1065, %v1057
        %v1458 = vpack.c.b16 %v1066, %v1058
        %v1459 = vpack.c.b16 %v1075, %v1067
        %v1460 = vpack.c.b16 %v1076, %v1068
        %v1461 = vpack.c.b16 %v1077, %v1069
        %v1462 = vpack.c.b16 %v1078, %v1070
        %v1463 = vpack.c.b16 %v1079, %v1071
        %v1464 = vpack.c.b16 %v1080, %v1072
        %v1465 = vpack.c.b16 %v1081, %v1073
        %v1466 = vpack.c.b16 %v1082, %v1074
        %v1467 = vpack.c.b16 %v1091, %v1083
        %v1468 = vpack.c.b16 %v1092, %v1084
        %v1469 = vpack.c.b16 %v1093, %v1085
        %v1470 = vpack.c.b16 %v1094, %v1086
        %v1471 = vpack.c.b16 %v1095, %v1087
        %v1472 = vpack.c.b16 %v1096, %v1088
        %v1473 = vpack.c.b16 %v1097, %v1089
        %v1474 = vpack.c.b16 %v1098, %v1090
        %v1475 = vpack.c.b16 %v1107, %v1099
        %v1476 = vpack.c.b16 %v1108, %v1100
        %v1477 = vpack.c.b16 %v1109, %v1101
        %v1478 = vpack.c.b16 %v1110, %v1102
        %v1479 = vpack.c.b16 %v1111, %v1103
        %v1480 = vpack.c.b16 %v1112, %v1104
        %v1481 = vpack.c.b16 %v1113, %v1105
        %v1482 = vpack.c.b16 %v1114, %v1106
        %v1483 = vpack.c.b16 %v1123, %v1115
        %v1484 = vpack.c.b16 %v1124, %v1116
        %v1485 = vpack.c.b16 %v1125, %v1117
        %v1486 = vpack.c.b16 %v1126, %v1118
        %v1487 = vpack.c.b16 %v1127, %v1119
        %v1488 = vpack.c.b16 %v1128, %v1120
        %v1489 = vpack.c.b16 %v1129, %v1121
        %v1490 = vpack.c.b16 %v1130, %v1122
        %v1491 = vpack.c.b16 %v1139, %v1131
        %v1492 = vpack.c.b16 %v1140, %v1132
        %v1493 = vpack.c.b16 %v1141, %v1133
        %v1494 = vpack.c.b16 %v1142, %v1134
        %v1495 = vpack.c.b16 %v1143, %v1135
        %v1496 = vpack.c.b16 %v1144, %v1136
        %v1497 = vpack.c.b16 %v1145, %v1137
        %v1498 = vpack.c.b16 %v1146, %v1138
        %v1499 = vpack.c.b16 %v1155, %v1147
        %v1500 = vpack.c.b16 %v1156, %v1148
        %v1501 = vpack.c.b16 %v1157, %v1149
        %v1502 = vpack.c.b16 %v1158, %v1150
        %v1503 = vpack.c.b16 %v1159, %v1151
        %v1504 = vpack.c.b16 %v1160, %v1152
        %v1505 = vpack.c.b16 %v1161, %v1153
        %v1506 = vpack.c.b16 %v1162, %v1154
        %v1507 = vpack.c.b16 %v1171, %v1163
        %v1508 = vpack.c.b16 %v1172, %v1164
        %v1509 = vpack.c.b16 %v1173, %v1165
        %v1510 = vpack.c.b16 %v1174, %v1166
        %v1511 = vpack.c.b16 %v1175, %v1167
        %v1512 = vpack.c.b16 %v1176, %v1168
        %v1513 = vpack.c.b16 %v1177, %v1169
        %v1514 = vpack.c.b16 %v1178, %v1170
        %v1515 = vpack.c.b16 %v1187, %v1179
        %v1516 = vpack.c.b16 %v1188, %v1180
        %v1517 = vpack.c.b16 %v1189, %v1181
        %v1518 = vpack.c.b16 %v1190, %v1182
        %v1519 = vpack.c.b16 %v1191, %v1183
        %v1520 = vpack.c.b16 %v1192, %v1184
        %v1521 = vpack.c.b16 %v1193, %v1185
        %v1522 = vpack.c.b16 %v1194, %v1186
        %v1523 = vpack.c.b16 %v1203, %v1195
        %v1524 = vpack.c.b16 %v1204, %v1196
        %v1525 = vpack.c.b16 %v1205, %v1197
        %v1526 = vpack.c.b16 %v1206, %v1198
        %v1527 = vpack.c.b16 %v1207, %v1199
        %v1528 = vpack.c.b16 %v1208, %v1200
        %v1529 = vpack.c.b16 %v1209, %v1201
        %v1530 = vpack.c.b16 %v1210, %v1202
        %v1531 = vpack.c.b16 %v1219, %v1211
        %v1532 = vpack.c.b16 %v1220, %v1212
        %v1533 = vpack.c.b16 %v1221, %v1213
        %v1534 = vpack.c.b16 %v1222, %v1214
        %v1535 = vpack.c.b16 %v1223, %v1215
        %v1536 = vpack.c.b16 %v1224, %v1216
        %v1537 = vpack.c.b16 %v1225, %v1217
        %v1538 = vpack.c.b16 %v1226, %v1218
        %v1539 = vpack.c.b16 %v1235, %v1227
        %v1540 = vpack.c.b16 %v1236, %v1228
        %v1541 = vpack.c.b16 %v1237, %v1229
        %v1542 = vpack.c.b16 %v1238, %v1230
        %v1543 = vpack.c.b16 %v1239, %v1231
        %v1544 = vpack.c.b16 %v1240, %v1232
        %v1545 = vpack.c.b16 %v1241, %v1233
        %v1546 = vpack.c.b16 %v1242, %v1234
        %v1547 = vpack.c.b16 %v1251, %v1243
        %v1548 = vpack.c.b16 %v1252, %v1244
        %v1549 = vpack.c.b16 %v1253, %v1245
        %v1550 = vpack.c.b16 %v1254, %v1246
        %v1551 = vpack.c.b16 %v1255, %v1247
        %v1552 = vpack.c.b16 %v1256, %v1248
        %v1553 = vpack.c.b16 %v1257, %v1249
        %v1554 = vpack.c.b16 %v1258, %v1250
        %v1555 = vpack.c.b16 %v1267, %v1259
        %v1556 = vpack.c.b16 %v1268, %v1260
        %v1557 = vpack.c.b16 %v1269, %v1261
        %v1558 = vpack.c.b16 %v1270, %v1262
        %v1559 = vpack.c.b16 %v1271, %v1263
        %v1560 = vpack.c.b16 %v1272, %v1264
        %v1561 = vpack.c.b16 %v1273, %v1265
        %v1562 = vpack.c.b16 %v1274, %v1266
        %v1563 = vpack.c.b16 %v1283, %v1275
        %v1564 = vpack.c.b16 %v1284, %v1276
        %v1565 = vpack.c.b16 %v1285, %v1277
        %v1566 = vpack.c.b16 %v1286, %v1278
        %v1567 = vpack.c.b16 %v1287, %v1279
        %v1568 = vpack.c.b16 %v1288, %v1280
        %v1569 = vpack.c.b16 %v1289, %v1281
        %v1570 = vpack.c.b16 %v1290, %v1282
        %v1571 = vpack.c.b16 %v1299, %v1291
        %v1572 = vpack.c.b16 %v1300, %v1292
        %v1573 = vpack.c.b16 %v1301, %v1293
        %v1574 = vpack.c.b16 %v1302, %v1294
        %v1575 = vpack.c.b16 %v1303, %v1295
        %v1576 = vpack.c.b16 %v1304, %v1296
        %v1577 = vpack.c.b16 %v1305, %v1297
        %v1578 = vpack.c.b16 %v1306, %v1298
        %v1579 = vpack.c.b16 %v1315, %v1307
        %v1580 = vpack.c.b16 %v1316, %v1308
        %v1581 = vpack.c.b16 %v1317, %v1309
        %v1582 = vpack.c.b16 %v1318, %v1310
        %v1583 = vpack.c.b16 %v1319, %v1311
        %v1584 = vpack.c.b16 %v1320, %v1312
        %v1585 = vpack.c.b16 %v1321, %v1313
        %v1586 = vpack.c.b16 %v1322, %v1314
        %v1587 = vpack.c.b16 %v1331, %v1323
        %v1588 = vpack.c.b16 %v1332, %v1324
        %v1589 = vpack.c.b16 %v1333, %v1325
        %v1590 = vpack.c.b16 %v1334, %v1326
        %v1591 = vpack.c.b16 %v1335, %v1327
        %v1592 = vpack.c.b16 %v1336, %v1328
        %v1593 = vpack.c.b16 %v1337, %v1329
        %v1594 = vpack.c.b16 %v1338, %v1330
        %1851 = vmatprep.subr.bf16.mxu0 %v1340
        %1852 = vmatpush1.bf16.msra.mxu0 %v1339
        %1853 = vmatprep.subr.bf16.mxu0 %v1348
        %1854 = vmatpush1.bf16.msra.mxu0 %v1347
        %1855 = vmatprep.subr.bf16.mxu0 %v1356
        %1856 = vmatpush1.bf16.msra.mxu0 %v1355
        %1857 = vmatprep.subr.bf16.mxu0 %v1364
        %1858 = vmatpush1.bf16.msra.mxu0 %v1363
        %1859 = vmatprep.subr.bf16.mxu0 %v1372
        %1860 = vmatpush1.bf16.msra.mxu0 %v1371
        %1861 = vmatprep.subr.bf16.mxu0 %v1380
        %1862 = vmatpush1.bf16.msra.mxu0 %v1379
        %1863 = vmatprep.subr.bf16.mxu0 %v1388
        %1864 = vmatpush1.bf16.msra.mxu0 %v1387
        %1865 = vmatprep.subr.bf16.mxu0 %v1396
        %1866 = vmatpush1.bf16.msra.mxu0 %v1395
        %1867 = vmatprep.subr.bf16.mxu0 %v1404
        %1868 = vmatpush1.bf16.msra.mxu0 %v1403
        %1869 = vmatprep.subr.bf16.mxu0 %v1412
        %1870 = vmatpush1.bf16.msra.mxu0 %v1411
        %1871 = vmatprep.subr.bf16.mxu0 %v1420
        %1872 = vmatpush1.bf16.msra.mxu0 %v1419
        %1873 = vmatprep.subr.bf16.mxu0 %v1428
        %1874 = vmatpush1.bf16.msra.mxu0 %v1427
        %1875 = vmatprep.subr.bf16.mxu0 %v1436
        %1876 = vmatpush1.bf16.msra.mxu0 %v1435
        %1877 = vmatprep.subr.bf16.mxu0 %v1444
        %1878 = vmatpush1.bf16.msra.mxu0 %v1443
        %1879 = vmatprep.subr.bf16.mxu0 %v1452
        %1880 = vmatpush1.bf16.msra.mxu0 %v1451
        %1881 = vmatprep.subr.bf16.mxu0 %v1460
        %1882 = vmatpush1.bf16.msra.mxu0 %v1459
        %1883 = vmatprep.mubr.bf16.mxu0 %v564
        %1884 = vmatmul.mubr.bf16.gmra.mrb[0].mxu0 %v563
        %v1885 = vpop.f32.mrb[0].mxu0
        %v1886 = vadd.f32 0.0, %v1885
        %v1887 = vpop.f32.mrb[0].mxu0
        %v1888 = vadd.f32 0.0, %v1887
        %v1889 = vpop.f32.mrb[0].mxu0
        %v1890 = vpop.f32.mrb[0].mxu0
        %1891 = vdwg.mxu0
        %1892 = vmatprep.subr.bf16.mxu0 %v1468
        %1893 = vmatpush1.bf16.msra.mxu0 %v1467
        %1894 = vmatprep.subr.bf16.mxu0 %v1476
        %1895 = vmatpush1.bf16.msra.mxu0 %v1475
        %1896 = vmatprep.subr.bf16.mxu0 %v1484
        %1897 = vmatpush1.bf16.msra.mxu0 %v1483
        %1898 = vmatprep.subr.bf16.mxu0 %v1492
        %1899 = vmatpush1.bf16.msra.mxu0 %v1491
        %1900 = vmatprep.subr.bf16.mxu0 %v1500
        %1901 = vmatpush1.bf16.msra.mxu0 %v1499
        %1902 = vmatprep.subr.bf16.mxu0 %v1508
        %1903 = vmatpush1.bf16.msra.mxu0 %v1507
        %1904 = vmatprep.subr.bf16.mxu0 %v1516
        %1905 = vmatpush1.bf16.msra.mxu0 %v1515
        %1906 = vmatprep.subr.bf16.mxu0 %v1524
        %1907 = vmatpush1.bf16.msra.mxu0 %v1523
        %1908 = vmatprep.subr.bf16.mxu0 %v1532
        %1909 = vmatpush1.bf16.msra.mxu0 %v1531
        %1910 = vmatprep.subr.bf16.mxu0 %v1540
        %1911 = vmatpush1.bf16.msra.mxu0 %v1539
        %1912 = vmatprep.subr.bf16.mxu0 %v1548
        %1913 = vmatpush1.bf16.msra.mxu0 %v1547
        %1914 = vmatprep.subr.bf16.mxu0 %v1556
        %1915 = vmatpush1.bf16.msra.mxu0 %v1555
        %1916 = vmatprep.subr.bf16.mxu0 %v1564
        %1917 = vmatpush1.bf16.msra.mxu0 %v1563
        %1918 = vmatprep.subr.bf16.mxu0 %v1572
        %1919 = vmatpush1.bf16.msra.mxu0 %v1571
        %1920 = vmatprep.subr.bf16.mxu0 %v1580
        %1921 = vmatpush1.bf16.msra.mxu0 %v1579
        %1922 = vmatprep.subr.bf16.mxu0 %v1588
        %1923 = vmatpush1.bf16.msra.mxu0 %v1587
        %1924 = vmatprep.mubr.bf16.mxu0 %v566
        %1925 = vmatmul.mubr.bf16.gmra.mrb[0].mxu0 %v565
        %v1926 = vpop.f32.mrb[0].mxu0
        %v1927 = vadd.f32 %v1886, %v1926
        %v1928 = vpop.f32.mrb[0].mxu0
        %v1929 = vadd.f32 %v1888, %v1928
        %v1930 = vpop.f32.mrb[0].mxu0
        %v1931 = vpop.f32.mrb[0].mxu0
        %1932 = vdwg.mxu0
        %1933 = vmatprep.subr.bf16.mxu0 %v1342
        %1934 = vmatpush1.bf16.msra.mxu0 %v1341
        %1935 = vmatprep.subr.bf16.mxu0 %v1350
        %1936 = vmatpush1.bf16.msra.mxu0 %v1349
        %1937 = vmatprep.subr.bf16.mxu0 %v1358
        %1938 = vmatpush1.bf16.msra.mxu0 %v1357
        %1939 = vmatprep.subr.bf16.mxu0 %v1366
        %1940 = vmatpush1.bf16.msra.mxu0 %v1365
        %1941 = vmatprep.subr.bf16.mxu0 %v1374
        %1942 = vmatpush1.bf16.msra.mxu0 %v1373
        %1943 = vmatprep.subr.bf16.mxu0 %v1382
        %1944 = vmatpush1.bf16.msra.mxu0 %v1381
        %1945 = vmatprep.subr.bf16.mxu0 %v1390
        %1946 = vmatpush1.bf16.msra.mxu0 %v1389
        %1947 = vmatprep.subr.bf16.mxu0 %v1398
        %1948 = vmatpush1.bf16.msra.mxu0 %v1397
        %1949 = vmatprep.subr.bf16.mxu0 %v1406
        %1950 = vmatpush1.bf16.msra.mxu0 %v1405
        %1951 = vmatprep.subr.bf16.mxu0 %v1414
        %1952 = vmatpush1.bf16.msra.mxu0 %v1413
        %1953 = vmatprep.subr.bf16.mxu0 %v1422
        %1954 = vmatpush1.bf16.msra.mxu0 %v1421
        %1955 = vmatprep.subr.bf16.mxu0 %v1430
        %1956 = vmatpush1.bf16.msra.mxu0 %v1429
        %1957 = vmatprep.subr.bf16.mxu0 %v1438
        %1958 = vmatpush1.bf16.msra.mxu0 %v1437
        %1959 = vmatprep.subr.bf16.mxu0 %v1446
        %1960 = vmatpush1.bf16.msra.mxu0 %v1445
        %1961 = vmatprep.subr.bf16.mxu0 %v1454
        %1962 = vmatpush1.bf16.msra.mxu0 %v1453
        %1963 = vmatprep.subr.bf16.mxu0 %v1462
        %1964 = vmatpush1.bf16.msra.mxu0 %v1461
        %1965 = vmatprep.mubr.bf16.mxu0 %v564
        %1966 = vmatmul.mubr.bf16.gmra.mrb[0].mxu0 %v563
        %v1967 = vpop.f32.mrb[0].mxu0
        %v1968 = vadd.f32 0.0, %v1967
        %v1969 = vpop.f32.mrb[0].mxu0
        %v1970 = vadd.f32 0.0, %v1969
        %v1971 = vpop.f32.mrb[0].mxu0
        %v1972 = vpop.f32.mrb[0].mxu0
        %1973 = vdwg.mxu0
        %1974 = vmatprep.subr.bf16.mxu0 %v1470
        %1975 = vmatpush1.bf16.msra.mxu0 %v1469
        %1976 = vmatprep.subr.bf16.mxu0 %v1478
        %1977 = vmatpush1.bf16.msra.mxu0 %v1477
        %1978 = vmatprep.subr.bf16.mxu0 %v1486
        %1979 = vmatpush1.bf16.msra.mxu0 %v1485
        %1980 = vmatprep.subr.bf16.mxu0 %v1494
        %1981 = vmatpush1.bf16.msra.mxu0 %v1493
        %1982 = vmatprep.subr.bf16.mxu0 %v1502
        %1983 = vmatpush1.bf16.msra.mxu0 %v1501
        %1984 = vmatprep.subr.bf16.mxu0 %v1510
        %1985 = vmatpush1.bf16.msra.mxu0 %v1509
        %1986 = vmatprep.subr.bf16.mxu0 %v1518
        %1987 = vmatpush1.bf16.msra.mxu0 %v1517
        %1988 = vmatprep.subr.bf16.mxu0 %v1526
        %1989 = vmatpush1.bf16.msra.mxu0 %v1525
        %1990 = vmatprep.subr.bf16.mxu0 %v1534
        %1991 = vmatpush1.bf16.msra.mxu0 %v1533
        %1992 = vmatprep.subr.bf16.mxu0 %v1542
        %1993 = vmatpush1.bf16.msra.mxu0 %v1541
        %1994 = vmatprep.subr.bf16.mxu0 %v1550
        %1995 = vmatpush1.bf16.msra.mxu0 %v1549
        %1996 = vmatprep.subr.bf16.mxu0 %v1558
        %1997 = vmatpush1.bf16.msra.mxu0 %v1557
        %1998 = vmatprep.subr.bf16.mxu0 %v1566
        %1999 = vmatpush1.bf16.msra.mxu0 %v1565
        %2000 = vmatprep.subr.bf16.mxu0 %v1574
        %2001 = vmatpush1.bf16.msra.mxu0 %v1573
        %2002 = vmatprep.subr.bf16.mxu0 %v1582
        %2003 = vmatpush1.bf16.msra.mxu0 %v1581
        %2004 = vmatprep.subr.bf16.mxu0 %v1590
        %2005 = vmatpush1.bf16.msra.mxu0 %v1589
        %2006 = vmatprep.mubr.bf16.mxu0 %v566
        %2007 = vmatmul.mubr.bf16.gmra.mrb[0].mxu0 %v565
        %v2008 = vpop.f32.mrb[0].mxu0
        %v2009 = vadd.f32 %v1968, %v2008
        %v2010 = vpop.f32.mrb[0].mxu0
        %v2011 = vadd.f32 %v1970, %v2010
        %v2012 = vpop.f32.mrb[0].mxu0
        %v2013 = vpop.f32.mrb[0].mxu0
        %2014 = vdwg.mxu0
        %2015 = vmatprep.subr.bf16.mxu0 %v1344
        %2016 = vmatpush1.bf16.msra.mxu0 %v1343
        %2017 = vmatprep.subr.bf16.mxu0 %v1352
        %2018 = vmatpush1.bf16.msra.mxu0 %v1351
        %2019 = vmatprep.subr.bf16.mxu0 %v1360
        %2020 = vmatpush1.bf16.msra.mxu0 %v1359
        %2021 = vmatprep.subr.bf16.mxu0 %v1368
        %2022 = vmatpush1.bf16.msra.mxu0 %v1367
        %2023 = vmatprep.subr.bf16.mxu0 %v1376
        %2024 = vmatpush1.bf16.msra.mxu0 %v1375
        %2025 = vmatprep.subr.bf16.mxu0 %v1384
        %2026 = vmatpush1.bf16.msra.mxu0 %v1383
        %2027 = vmatprep.subr.bf16.mxu0 %v1392
        %2028 = vmatpush1.bf16.msra.mxu0 %v1391
        %2029 = vmatprep.subr.bf16.mxu0 %v1400
        %2030 = vmatpush1.bf16.msra.mxu0 %v1399
        %2031 = vmatprep.subr.bf16.mxu0 %v1408
        %2032 = vmatpush1.bf16.msra.mxu0 %v1407
        %2033 = vmatprep.subr.bf16.mxu0 %v1416
        %2034 = vmatpush1.bf16.msra.mxu0 %v1415
        %2035 = vmatprep.subr.bf16.mxu0 %v1424
        %2036 = vmatpush1.bf16.msra.mxu0 %v1423
        %2037 = vmatprep.subr.bf16.mxu0 %v1432
        %2038 = vmatpush1.bf16.msra.mxu0 %v1431
        %2039 = vmatprep.subr.bf16.mxu0 %v1440
        %2040 = vmatpush1.bf16.msra.mxu0 %v1439
        %2041 = vmatprep.subr.bf16.mxu0 %v1448
        %2042 = vmatpush1.bf16.msra.mxu0 %v1447
        %2043 = vmatprep.subr.bf16.mxu0 %v1456
        %2044 = vmatpush1.bf16.msra.mxu0 %v1455
        %2045 = vmatprep.subr.bf16.mxu0 %v1464
        %2046 = vmatpush1.bf16.msra.mxu0 %v1463
        %2047 = vmatprep.mubr.bf16.mxu0 %v564
        %2048 = vmatmul.mubr.bf16.gmra.mrb[0].mxu0 %v563
        %v2049 = vpop.f32.mrb[0].mxu0
        %v2050 = vadd.f32 0.0, %v2049
        %v2051 = vpop.f32.mrb[0].mxu0
        %v2052 = vadd.f32 0.0, %v2051
        %v2053 = vpop.f32.mrb[0].mxu0
        %v2054 = vpop.f32.mrb[0].mxu0
        %2055 = vdwg.mxu0
        %2056 = vmatprep.subr.bf16.mxu0 %v1472
        %2057 = vmatpush1.bf16.msra.mxu0 %v1471
        %2058 = vmatprep.subr.bf16.mxu0 %v1480
        %2059 = vmatpush1.bf16.msra.mxu0 %v1479
        %2060 = vmatprep.subr.bf16.mxu0 %v1488
        %2061 = vmatpush1.bf16.msra.mxu0 %v1487
        %2062 = vmatprep.subr.bf16.mxu0 %v1496
        %2063 = vmatpush1.bf16.msra.mxu0 %v1495
        %2064 = vmatprep.subr.bf16.mxu0 %v1504
        %2065 = vmatpush1.bf16.msra.mxu0 %v1503
        %2066 = vmatprep.subr.bf16.mxu0 %v1512
        %2067 = vmatpush1.bf16.msra.mxu0 %v1511
        %2068 = vmatprep.subr.bf16.mxu0 %v1520
        %2069 = vmatpush1.bf16.msra.mxu0 %v1519
        %2070 = vmatprep.subr.bf16.mxu0 %v1528
        %2071 = vmatpush1.bf16.msra.mxu0 %v1527
        %2072 = vmatprep.subr.bf16.mxu0 %v1536
        %2073 = vmatpush1.bf16.msra.mxu0 %v1535
        %2074 = vmatprep.subr.bf16.mxu0 %v1544
        %2075 = vmatpush1.bf16.msra.mxu0 %v1543
        %2076 = vmatprep.subr.bf16.mxu0 %v1552
        %2077 = vmatpush1.bf16.msra.mxu0 %v1551
        %2078 = vmatprep.subr.bf16.mxu0 %v1560
        %2079 = vmatpush1.bf16.msra.mxu0 %v1559
        %2080 = vmatprep.subr.bf16.mxu0 %v1568
        %2081 = vmatpush1.bf16.msra.mxu0 %v1567
        %2082 = vmatprep.subr.bf16.mxu0 %v1576
        %2083 = vmatpush1.bf16.msra.mxu0 %v1575
        %2084 = vmatprep.subr.bf16.mxu0 %v1584
        %2085 = vmatpush1.bf16.msra.mxu0 %v1583
        %2086 = vmatprep.subr.bf16.mxu0 %v1592
        %2087 = vmatpush1.bf16.msra.mxu0 %v1591
        %2088 = vmatprep.mubr.bf16.mxu0 %v566
        %2089 = vmatmul.mubr.bf16.gmra.mrb[0].mxu0 %v565
        %v2090 = vpop.f32.mrb[0].mxu0
        %v2091 = vadd.f32 %v2050, %v2090
        %v2092 = vpop.f32.mrb[0].mxu0
        %v2093 = vadd.f32 %v2052, %v2092
        %v2094 = vpop.f32.mrb[0].mxu0
        %v2095 = vpop.f32.mrb[0].mxu0
        %2096 = vdwg.mxu0
        %2097 = vmatprep.subr.bf16.mxu0 %v1346
        %2098 = vmatpush1.bf16.msra.mxu0 %v1345
        %2099 = vmatprep.subr.bf16.mxu0 %v1354
        %2100 = vmatpush1.bf16.msra.mxu0 %v1353
        %2101 = vmatprep.subr.bf16.mxu0 %v1362
        %2102 = vmatpush1.bf16.msra.mxu0 %v1361
        %2103 = vmatprep.subr.bf16.mxu0 %v1370
        %2104 = vmatpush1.bf16.msra.mxu0 %v1369
        %2105 = vmatprep.subr.bf16.mxu0 %v1378
        %2106 = vmatpush1.bf16.msra.mxu0 %v1377
        %2107 = vmatprep.subr.bf16.mxu0 %v1386
        %2108 = vmatpush1.bf16.msra.mxu0 %v1385
        %2109 = vmatprep.subr.bf16.mxu0 %v1394
        %2110 = vmatpush1.bf16.msra.mxu0 %v1393
        %2111 = vmatprep.subr.bf16.mxu0 %v1402
        %2112 = vmatpush1.bf16.msra.mxu0 %v1401
        %2113 = vmatprep.subr.bf16.mxu0 %v1410
        %2114 = vmatpush1.bf16.msra.mxu0 %v1409
        %2115 = vmatprep.subr.bf16.mxu0 %v1418
        %2116 = vmatpush1.bf16.msra.mxu0 %v1417
        %2117 = vmatprep.subr.bf16.mxu0 %v1426
        %2118 = vmatpush1.bf16.msra.mxu0 %v1425
        %2119 = vmatprep.subr.bf16.mxu0 %v1434
        %2120 = vmatpush1.bf16.msra.mxu0 %v1433
        %2121 = vmatprep.subr.bf16.mxu0 %v1442
        %2122 = vmatpush1.bf16.msra.mxu0 %v1441
        %2123 = vmatprep.subr.bf16.mxu0 %v1450
        %2124 = vmatpush1.bf16.msra.mxu0 %v1449
        %2125 = vmatprep.subr.bf16.mxu0 %v1458
        %2126 = vmatpush1.bf16.msra.mxu0 %v1457
        %2127 = vmatprep.subr.bf16.mxu0 %v1466
        %2128 = vmatpush1.bf16.msra.mxu0 %v1465
        %2129 = vmatprep.mubr.bf16.mxu0 %v564
        %2130 = vmatmul.mubr.bf16.gmra.mrb[0].mxu0 %v563
        %v2131 = vpop.f32.mrb[0].mxu0
        %v2132 = vadd.f32 0.0, %v2131
        %v2133 = vpop.f32.mrb[0].mxu0
        %v2134 = vadd.f32 0.0, %v2133
        %v2135 = vpop.f32.mrb[0].mxu0
        %v2136 = vpop.f32.mrb[0].mxu0
        %2137 = vdwg.mxu0
        %2138 = vmatprep.subr.bf16.mxu0 %v1474
        %2139 = vmatpush1.bf16.msra.mxu0 %v1473
        %2140 = vmatprep.subr.bf16.mxu0 %v1482
        %2141 = vmatpush1.bf16.msra.mxu0 %v1481
        %2142 = vmatprep.subr.bf16.mxu0 %v1490
        %2143 = vmatpush1.bf16.msra.mxu0 %v1489
        %2144 = vmatprep.subr.bf16.mxu0 %v1498
        %2145 = vmatpush1.bf16.msra.mxu0 %v1497
        %2146 = vmatprep.subr.bf16.mxu0 %v1506
        %2147 = vmatpush1.bf16.msra.mxu0 %v1505
        %2148 = vmatprep.subr.bf16.mxu0 %v1514
        %2149 = vmatpush1.bf16.msra.mxu0 %v1513
        %2150 = vmatprep.subr.bf16.mxu0 %v1522
        %2151 = vmatpush1.bf16.msra.mxu0 %v1521
        %2152 = vmatprep.subr.bf16.mxu0 %v1530
        %2153 = vmatpush1.bf16.msra.mxu0 %v1529
        %2154 = vmatprep.subr.bf16.mxu0 %v1538
        %2155 = vmatpush1.bf16.msra.mxu0 %v1537
        %2156 = vmatprep.subr.bf16.mxu0 %v1546
        %2157 = vmatpush1.bf16.msra.mxu0 %v1545
        %2158 = vmatprep.subr.bf16.mxu0 %v1554
        %2159 = vmatpush1.bf16.msra.mxu0 %v1553
        %2160 = vmatprep.subr.bf16.mxu0 %v1562
        %2161 = vmatpush1.bf16.msra.mxu0 %v1561
        %2162 = vmatprep.subr.bf16.mxu0 %v1570
        %2163 = vmatpush1.bf16.msra.mxu0 %v1569
        %2164 = vmatprep.subr.bf16.mxu0 %v1578
        %2165 = vmatpush1.bf16.msra.mxu0 %v1577
        %2166 = vmatprep.subr.bf16.mxu0 %v1586
        %2167 = vmatpush1.bf16.msra.mxu0 %v1585
        %2168 = vmatprep.subr.bf16.mxu0 %v1594
        %2169 = vmatpush1.bf16.msra.mxu0 %v1593
        %2170 = vmatprep.mubr.bf16.mxu0 %v566
        %2171 = vmatmul.mubr.bf16.gmra.mrb[0].mxu0 %v565
        %v2172 = vpop.f32.mrb[0].mxu0
        %v2173 = vadd.f32 %v2132, %v2172
        %v2174 = vpop.f32.mrb[0].mxu0
        %v2175 = vadd.f32 %v2134, %v2174
        %v2176 = vpop.f32.mrb[0].mxu0
        %v2177 = vpop.f32.mrb[0].mxu0
        %2178 = vdwg.mxu0
        %v2179 = vadd.f32 %v291, %v1927
        %v2180 = vadd.f32 %v292, %v1929
        %v2181 = vadd.f32 %v293, %v2009
        %v2182 = vadd.f32 %v294, %v2011
        %v2183 = vadd.f32 %v295, %v2091
        %v2184 = vadd.f32 %v296, %v2093
        %v2185 = vadd.f32 %v297, %v2173
        %v2186 = vadd.f32 %v298, %v2175
        %2187 = vst [vmem:[%s274] sm:$0xff] %v2179
        %2188 = vst [vmem:[%s274 + $0x8] sm:$0xff] %v2180
        %2189 = vst [vmem:[%s274 + $0x10] sm:$0xff] %v2181
        %2190 = vst [vmem:[%s274 + $0x18] sm:$0xff] %v2182
        %2191 = vst [vmem:[%s274 + $0x20] sm:$0xff] %v2183
        %2192 = vst [vmem:[%s274 + $0x28] sm:$0xff] %v2184
        %2193 = vst [vmem:[%s274 + $0x30] sm:$0xff] %v2185
        %2194 = vst [vmem:[%s274 + $0x38] sm:$0xff] %v2186
        // Predicated region
        $region49: #{tpu_custom_call.1} parent=31 // pred_check
          %p2195 = pneg %p279
        $region50: #{tpu_custom_call.1} parent=31 // pred_check_branch
          %2197 = sbr.rel (%p2195) target = $region52
        $region51: #{tpu_custom_call.1} parent=31 // pred_region
          %v2198 = vld [vmem:[%s274] sm:$0xff]
          %v2199 = vld [vmem:[%s274 + $0x8] sm:$0xff]
          %v2200 = vld [vmem:[%s274 + $0x10] sm:$0xff]
          %v2201 = vld [vmem:[%s274 + $0x18] sm:$0xff]
          %v2202 = vld [vmem:[%s274 + $0x20] sm:$0xff]
          %v2203 = vld [vmem:[%s274 + $0x28] sm:$0xff]
          %v2204 = vld [vmem:[%s274 + $0x30] sm:$0xff]
          %v2205 = vld [vmem:[%s274 + $0x38] sm:$0xff]
          %v2206 = vld [vmem:[%s247] sm:$0xff]
          %v2208 = vlaneseq
          %v2209 = vshrl.u32 %v2208, 7
          %v2210 = vsub.s32 0, %v2209
          %v2211 = vrot.slane %v2206, %v2210
          %v2212 = vlaneseq
          %v2213 = vshrl.u32 %v2212, 7
          %v2214 = vsub.s32 1, %v2213
          %v2215 = vrot.slane %v2206, %v2214
          %v2216 = vlaneseq
          %v2217 = vshrl.u32 %v2216, 7
          %v2218 = vsub.s32 2, %v2217
          %v2219 = vrot.slane %v2206, %v2218
          %v2220 = vlaneseq
          %v2221 = vshrl.u32 %v2220, 7
          %v2222 = vsub.s32 3, %v2221
          %v2223 = vrot.slane %v2206, %v2222
          %v2224 = vlaneseq
          %v2225 = vshrl.u32 %v2224, 7
          %v2226 = vsub.s32 4, %v2225
          %v2227 = vrot.slane %v2206, %v2226
          %v2228 = vlaneseq
          %v2229 = vshrl.u32 %v2228, 7
          %v2230 = vsub.s32 5, %v2229
          %v2231 = vrot.slane %v2206, %v2230
          %v2232 = vlaneseq
          %v2233 = vshrl.u32 %v2232, 7
          %v2234 = vsub.s32 6, %v2233
          %v2235 = vrot.slane %v2206, %v2234
          %v2236 = vlaneseq
          %v2237 = vshrl.u32 %v2236, 7
          %v2238 = vsub.s32 7, %v2237
          %v2239 = vrot.slane %v2206, %v2238
          %v2248 = vadd.f32 %v2198, %v2211
          %v2249 = vadd.f32 %v2199, %v2215
          %v2250 = vadd.f32 %v2200, %v2219
          %v2251 = vadd.f32 %v2201, %v2223
          %v2252 = vadd.f32 %v2202, %v2227
          %v2253 = vadd.f32 %v2203, %v2231
          %v2254 = vadd.f32 %v2204, %v2235
          %v2255 = vadd.f32 %v2205, %v2239
          %2256 = vst [vmem:[%s274] sm:$0xff] %v2248
          %2257 = vst [vmem:[%s274 + $0x8] sm:$0xff] %v2249
          %2258 = vst [vmem:[%s274 + $0x10] sm:$0xff] %v2250
          %2259 = vst [vmem:[%s274 + $0x18] sm:$0xff] %v2251
          %2260 = vst [vmem:[%s274 + $0x20] sm:$0xff] %v2252
          %2261 = vst [vmem:[%s274 + $0x28] sm:$0xff] %v2253
          %2262 = vst [vmem:[%s274 + $0x30] sm:$0xff] %v2254
          %2263 = vst [vmem:[%s274 + $0x38] sm:$0xff] %v2255
        $region52: #{tpu_custom_call.1} parent=31 // pred_fallthru
          _
        %s2264 = sand.u32 %s132, 1
        %s2265 = scalar_lea.sflag [#allocation4], %s2264
        %s2266 = sand.u32 %s132, 1
        %s2267 = smul.addr %s2266, 64
        %s2268 = scalar_lea.vmem [#allocation8], %s2267
        // Predicated region
        $region53: #{tpu_custom_call.1} parent=31 // pred_check
          %p2269 = pneg %p142
        $region54: #{tpu_custom_call.1} parent=31 // pred_check_branch
          %2271 = sbr.rel (%p2269) target = $region56
        $region55: #{tpu_custom_call.1} parent=31 // pred_region
          %s2272 = smul.u32 8, %s27
          %s2274 = ssub.s32 1024, 1024
          %2275 = vsyncadd %s2265, %s2274
          %s2276 = smul.addr %s26, 16
          %s2277 = sadd.s32 %s2272, %s2276
          %s2278 = smul.addr %s2277, 128
          %s2279 = scalar_lea.hbm %s3, %s2278
          %s2281 = sshll.u32 %s2268, 4
          %s2282 = int_to_ptr.vmem [resolvable:$true] %s2281
          %2284 = dma.vmem_to_hbm [thread:$0]  %s2282, 1024, %s2279, %s2265
        $region56: #{tpu_custom_call.1} parent=31 // pred_fallthru
          _
      $region32: #{tpu_custom_call.1} parent=5 // pred_fallthru
        _
      %p2285 = scmp.le.s32.totalorder 2, %s16
      // Predicated region
      $region57: #{tpu_custom_call.1} parent=5 // pred_check
        %p2286 = pneg %p2285
      $region58: #{tpu_custom_call.1} parent=5 // pred_check_branch
        %2288 = sbr.rel (%p2286) target = $region60
      $region59: #{tpu_custom_call.1} parent=5 // pred_region
        %s2289 = ssub.s32 %s16, 2
        // Predicated region
        $region61: #{tpu_custom_call.1} parent=59 // pred_check
          %p2290 = pneg %p148
        $region62: #{tpu_custom_call.1} parent=59 // pred_check_branch
          %2292 = sbr.rel (%p2290) target = $region64
        $region63: #{tpu_custom_call.1} parent=59 // pred_region
          %s2293 = sand.u32 %s133, 1
          %s2294 = scalar_lea.sflag [#allocation4], %s2293
          %s2295 = sand.u32 %s133, 1
          %s2296 = smul.addr %s2295, 64
          %s2297 = scalar_lea.vmem [#allocation8], %s2296
          %2298 = dma.done %s2294, 1024
        $region64: #{tpu_custom_call.1} parent=59 // pred_fallthru
          _
      $region60: #{tpu_custom_call.1} parent=5 // pred_fallthru
        _
    $region6: #{tpu_custom_call.1} parent=1 // loop_footer
      %s20 = sadd.s32 1, %s16
    $region7: #{tpu_custom_call.1} parent=1 // loop_footer_branch
      %15 = sbr.rel target = $region3
    $region8: #{tpu_custom_call.1} parent=1 // loop_exit
      _
    %2299 = vsyncpa [#allocation3], 1
    %s2300 = scalar_lea.sflag [#allocation3], 1
    %2301 = vsyncpa %s2300, 1
    %2302 = vsyncpa [#allocation6], 1
    %s2303 = scalar_lea.sflag [#allocation6], 1
    %2304 = vsyncpa %s2303, 1
    %2305 = vsyncpa [#allocation4], 1
    %s2306 = scalar_lea.sflag [#allocation4], 1
    %2307 = vsyncpa %s2306, 1

</llo_original>
